<compile_context>
chip_gen: v7x
topology: tpu7x:2x2x1
jax: 0.10.0
libtpu: 0.0.40
codegen_flags: <defaults>
</compile_context>

<pallas_src>
import jax
import jax.numpy as jnp
from jax import lax
from jax.experimental import pallas as pl
from jax.experimental.pallas import tpu as pltpu

EPS = 1e-5


def _vmem_capacity_bytes():
    # Generation-aware VMEM capacity; conservative (v7x: 64 MiB/TC) fallback.
    try:
        info = pltpu.get_tpu_info()
        cap = getattr(info, "vmem_capacity_bytes", None)
        if cap:
            return int(cap)
    except Exception:
        pass
    return 64 << 20


# ---------------------------------------------------------------------------
# Fast path: whole pixel axis fits in one lane-aligned tile (n_mt == 1).
# ---------------------------------------------------------------------------
def _make_single_tile_kernel(m_true, inv_m, eps):
    def kernel(x_ref, w_ref, gamma_ref, beta_ref, o_ref):
        w = w_ref[...]                                # bf16 (cast once in wrapper)
        x = x_ref[...].astype(jnp.bfloat16)
        y = jnp.dot(w, x, preferred_element_type=jnp.float32)   # [Cout, M_pad] f32

        m_pad = y.shape[1]
        mean = jnp.sum(y, axis=1, keepdims=True) * inv_m
        # Exact two-pass variance; mask the zero-padded columns.
        lane = lax.broadcasted_iota(jnp.int32, (1, m_pad), 1)
        valid = lane < m_true
        centered = jnp.where(valid, y - mean, 0.0)
        var = jnp.sum(centered * centered, axis=1, keepdims=True) * inv_m

        a = gamma_ref[...] * lax.rsqrt(var + eps)     # folded scale
        b = beta_ref[...] - mean * a                  # folded shift
        o_ref[...] = jnp.maximum(y * a + b, 0.0).astype(o_ref.dtype)

    return kernel


# ---------------------------------------------------------------------------
# General path (n_mt > 1): two-phase grid over M tiles.
#   phase 0: matmul, shifted single-pass stats (K = first-tile per-channel mean),
#            Y kept resident in bf16 VMEM scratch.
#   phase 1: fold BN scale/shift once, per-tile normalize + ReLU (lane-dense out).
# ---------------------------------------------------------------------------
def _make_two_phase_kernel(tm, m_true, inv_m, eps):
    inv_tm = 1.0 / float(tm)

    def kernel(x_ref, w_ref, gamma_ref, beta_ref, o_ref,
               y_scr, sum_scr, sumsq_scr, k_scr, scale_scr, shift_scr):
        phase = pl.program_id(0)   # 0 = matmul + stats, 1 = normalize + ReLU
        mt = pl.program_id(1)      # M-tile index

        @pl.when(phase == 0)
        def _phase0():
            w = w_ref[...]                            # bf16
            x = x_ref[...].astype(jnp.bfloat16)
            y = jnp.dot(w, x, preferred_element_type=jnp.float32)   # [Cout, tm] f32

            @pl.when(mt == 0)
            def _init():
                # Shift point: first tile's per-channel mean (the first tile has
                # no padded columns when n_mt >= 2). Removes the E[y^2]-mean^2
                # cancellation of the plain single-pass form.
                k_scr[...] = jnp.sum(y, axis=1, keepdims=True) * inv_tm
                sum_scr[...] = jnp.zeros_like(sum_scr)
                sumsq_scr[...] = jnp.zeros_like(sumsq_scr)

            # Only the last tile can contain zero-padded columns.
            col = mt * tm + lax.broadcasted_iota(jnp.int32, (1, tm), 1)
            valid = col < m_true
            d = jnp.where(valid, y - k_scr[...], 0.0)
            sum_scr[...] += jnp.sum(jnp.where(valid, y, 0.0), axis=1, keepdims=True)
            sumsq_scr[...] += jnp.sum(d * d, axis=1, keepdims=True)

            y_scr[mt] = y.astype(y_scr.dtype)         # bf16 resident Y

        @pl.when(phase == 1)
        def _phase1():
            @pl.when(mt == 0)
            def _fold():
                mean = sum_scr[...] * inv_m
                dk = mean - k_scr[...]
                var = jnp.maximum(sumsq_scr[...] * inv_m - dk * dk, 0.0)
                a = gamma_ref[...] * lax.rsqrt(var + eps)
                scale_scr[...] = a
                shift_scr[...] = beta_ref[...] - mean * a

            y = y_scr[mt].astype(jnp.float32)
            # BN + affine folded into one FMA, then ReLU: a single VPU pass.
            o_ref[...] = jnp.maximum(
                y * scale_scr[...] + shift_scr[...], 0.0).astype(o_ref.dtype)

    return kernel


def fused_conv_bn_relu(x_nchw, conv_weight, gamma, beta, *, eps=EPS):
    """x_nchw: [N, Cin, H, W]; conv_weight: [Cout, Cin, 1, 1]; gamma/beta: [Cout]."""
    N, Cin, H, W = x_nchw.shape
    Cout = conv_weight.shape[0]
    M = N * H * W

    # Channels-leading matmul view: X [Cin, M]. Pure reshape when N == 1.
    if N == 1:
        x2d = x_nchw.reshape(Cin, M)
    else:
        # TODO(synk): for N > 1 this transpose is an extra HBM pass; could be
        # avoided by adding N as a Squeezed grid axis and accumulating stats
        # over (n, m) tiles.
        x2d = jnp.transpose(x_nchw, (1, 0, 2, 3)).reshape(Cin, M)

    # Tile policy: a single tile if the 128-aligned pixel axis fits in 512 lanes,
    # otherwise 512-wide tiles with the pixel axis padded to a multiple of 512.
    m_align = ((M + 127) // 128) * 128
    tm = min(512, m_align)
    M_pad = ((M + tm - 1) // tm) * tm
    n_mt = M_pad // tm
    if M_pad != M:
        # Zero columns contribute nothing to the (masked) statistics and the
        # padded output columns are sliced off below.
        x2d = jnp.pad(x2d, ((0, 0), (0, M_pad - M)))

    w2d = conv_weight.reshape(Cout, Cin).astype(jnp.bfloat16)   # cast once
    gamma2d = gamma.reshape(Cout, 1).astype(jnp.float32)
    beta2d = beta.reshape(Cout, 1).astype(jnp.float32)

    out_dtype = x_nchw.dtype
    out_itemsize = jnp.dtype(out_dtype).itemsize
    inv_m = 1.0 / float(M)        # true M, not the padded size
    vmem_cap = _vmem_capacity_bytes()

    cost = pl.CostEstimate(
        flops=2 * M_pad * Cin * Cout + 8 * M_pad * Cout,
        transcendentals=Cout,
        bytes_accessed=(4 * Cin * M_pad + 2 * Cout * Cin + 8 * Cout
                        + out_itemsize * Cout * M_pad),
    )

    if n_mt == 1:
        # ---------------- single-phase fast path (the module's fixed shape) ----
        kernel = _make_single_tile_kernel(M, inv_m, eps)
        needed = 2 * (Cin * tm * 4 + Cout * Cin * 2 + Cout * tm * out_itemsize) + 4 * Cout * 4
        vmem_limit = int(min(vmem_cap - (8 << 20), max(2 * needed, 16 << 20)))
        out2d = pl.pallas_call(
            kernel,
            out_shape=jax.ShapeDtypeStruct((Cout, M_pad), out_dtype),
            grid_spec=pltpu.PrefetchScalarGridSpec(
                num_scalar_prefetch=0,
                grid=(1,),
                in_specs=[
                    pl.BlockSpec((Cin, tm), lambda i: (0, 0)),     # X (full)
                    pl.BlockSpec((Cout, Cin), lambda i: (0, 0)),   # W (bf16)
                    pl.BlockSpec((Cout, 1), lambda i: (0, 0)),     # gamma
                    pl.BlockSpec((Cout, 1), lambda i: (0, 0)),     # beta
                ],
                out_specs=pl.BlockSpec((Cout, tm), lambda i: (0, 0)),
            ),
            compiler_params=pltpu.CompilerParams(
                dimension_semantics=("arbitrary",),
                vmem_limit_bytes=vmem_limit,
            ),
            cost_estimate=cost,
        )(x2d, w2d, gamma2d, beta2d)
    else:
        # ---------------- general two-phase path, Y resident in bf16 VMEM ------
        y_scratch_bytes = n_mt * Cout * tm * 2
        pipe_bytes = (2 * Cin * tm * 4               # X tile double-buffer (f32)
                      + 2 * Cout * Cin * 2           # W (bf16) buffers
                      + 2 * Cout * tm * out_itemsize # output tile double-buffer
                      + 5 * Cout * 4 * 8)            # small per-channel scratches
        headroom = 16 << 20                          # compiler-internal scratch etc.
        y_budget = vmem_cap - headroom - pipe_bytes
        # TODO(synk): for M too large to keep Y resident, spill unnormalized Y to
        # the HBM output in phase 0 and normalize in place via
        # input_output_aliases instead of recomputing the matmul.
        assert y_scratch_bytes <= y_budget, (
            f"resident-Y scratch ({y_scratch_bytes} B) exceeds the VMEM budget "
            f"({y_budget} B); see the HBM-spill TODO above.")
        vmem_limit = int(min(vmem_cap - (8 << 20),
                             max(y_scratch_bytes + pipe_bytes + (8 << 20), 24 << 20)))

        kernel = _make_two_phase_kernel(tm, M, inv_m, eps)
        last = n_mt - 1
        out2d = pl.pallas_call(
            kernel,
            out_shape=jax.ShapeDtypeStruct((Cout, M_pad), out_dtype),
            grid_spec=pltpu.PrefetchScalarGridSpec(
                num_scalar_prefetch=0,
                grid=(2, n_mt),   # (phase, M-tile); M-tiles innermost
                in_specs=[
                    # X streams through phase 0; in phase 1 the index is pinned to
                    # the *last* phase-0 block so no extra DMA at the boundary.
                    pl.BlockSpec((Cin, tm),
                                 lambda p, m: (0, (1 - p) * m + p * last)),
                    pl.BlockSpec((Cout, Cin), lambda p, m: (0, 0)),   # W (bf16)
                    pl.BlockSpec((Cout, 1), lambda p, m: (0, 0)),     # gamma
                    pl.BlockSpec((Cout, 1), lambda p, m: (0, 0)),     # beta
                ],
                # Output blocks are only produced in phase 1; during phase 0 the
                # index stays at block 0 and is never revisited after moving on.
                out_specs=pl.BlockSpec((Cout, tm), lambda p, m: (0, m * p)),
                scratch_shapes=[
                    pltpu.VMEM((n_mt, Cout, tm), jnp.bfloat16),  # resident Y (bf16)
                    pltpu.VMEM((Cout, 1), jnp.float32),          # sum
                    pltpu.VMEM((Cout, 1), jnp.float32),          # shifted sumsq
                    pltpu.VMEM((Cout, 1), jnp.float32),          # shift point K
                    pltpu.VMEM((Cout, 1), jnp.float32),          # folded scale
                    pltpu.VMEM((Cout, 1), jnp.float32),          # folded shift
                ],
            ),
            compiler_params=pltpu.CompilerParams(
                # Stats accumulate across M tiles and phase 1 depends on phase 0.
                # TODO(synk): on v7x (2 TC/chip) large-M cases could split the M
                # axis across cores with per-core partial stats + a combine step.
                dimension_semantics=("arbitrary", "arbitrary"),
                vmem_limit_bytes=vmem_limit,
            ),
            cost_estimate=cost,
        )(x2d, w2d, gamma2d, beta2d)

    out2d = out2d[:, :M]
    if N == 1:
        return out2d.reshape(1, Cout, H, W)
    return jnp.transpose(out2d.reshape(Cout, N, H, W), (1, 0, 2, 3))


def _reference(x_nchw, conv_weight, gamma, beta, eps=EPS):
    N, Cin, H, W = x_nchw.shape
    Cout = conv_weight.shape[0]
    x2d = jnp.transpose(x_nchw, (0, 2, 3, 1)).reshape(-1, Cin).astype(jnp.float32)
    w2d = conv_weight.reshape(Cout, Cin).astype(jnp.float32).T
    y = x2d @ w2d
    mean = jnp.mean(y, axis=0, keepdims=True)
    var = jnp.mean((y - mean) ** 2, axis=0, keepdims=True)
    out = (y - mean) / jnp.sqrt(var + eps) * gamma.reshape(1, -1) + beta.reshape(1, -1)
    out = jnp.maximum(out, 0.0)
    return jnp.transpose(out.reshape(N, H, W, Cout), (0, 3, 1, 2)).astype(x_nchw.dtype)


if __name__ == "__main__":
    key = jax.random.PRNGKey(0)
    k_x, k_w, k_g, k_b = jax.random.split(key, 4)

    N, C, H, W = 1, 320, 14, 14   # matches the module's fixed input
    x = jax.random.normal(k_x, (N, C, H, W), dtype=jnp.float32)
    conv_w = jax.random.normal(k_w, (C, C, 1, 1), dtype=jnp.float32) * 0.05
    gamma = 1.0 + 0.1 * jax.random.normal(k_g, (C,), dtype=jnp.float32)
    beta = 0.1 * jax.random.normal(k_b, (C,), dtype=jnp.float32)

    out = jax.block_until_ready(fused_conv_bn_relu(x, conv_w, gamma, beta))

    ref = _reference(x, conv_w, gamma, beta)
    assert out.shape == (N, C, H, W), out.shape
    max_err = float(jnp.max(jnp.abs(out - ref)))
    # bf16 MXU inputs vs the f32 reference -> slightly loose tolerance (accepted
    # contract; BN normalization keeps errors at the relative-bf16 level).
    assert jnp.allclose(out, ref, atol=3e-2, rtol=3e-2), \
        f"mismatch vs reference (max abs err {max_err})"

    print("KERNEL_OK")
</pallas_src>

<mosaic_0001>
module attributes {stable_mosaic.version = 11 : i64} {
  func.func @kernel(%arg0: i32, %arg1: memref<320x256xf32, #tpu.memory_space<vmem>>, %arg2: memref<320x320xbf16, #tpu.memory_space<vmem>>, %arg3: memref<320x1xf32, #tpu.memory_space<vmem>>, %arg4: memref<320x1xf32, #tpu.memory_space<vmem>>, %arg5: memref<320x256xf32, #tpu.memory_space<vmem>>) attributes {dimension_semantics = [#tpu.dimension_semantics<arbitrary>], iteration_bounds = array<i64: 1>, scalar_prefetch = 0 : i64, scratch_operands = 0 : i64, tpu.core_type = #tpu.core_type<tc>, window_params = [{pipeline_mode = #tpu.pipeline_mode<synchronous>, transform_indices = @transform_0, window_bounds = array<i64: 320, 256>}, {pipeline_mode = #tpu.pipeline_mode<synchronous>, transform_indices = @transform_1, window_bounds = array<i64: 320, 320>}, {pipeline_mode = #tpu.pipeline_mode<synchronous>, transform_indices = @transform_2, window_bounds = array<i64: 320, 1>}, {pipeline_mode = #tpu.pipeline_mode<synchronous>, transform_indices = @transform_3, window_bounds = array<i64: 320, 1>}, {pipeline_mode = #tpu.pipeline_mode<synchronous>, transform_indices = @transform_4, window_bounds = array<i64: 320, 256>}]} {
    %c0 = arith.constant 0 : index
    %c0_0 = arith.constant 0 : index
    %0 = vector.load %arg2[%c0, %c0_0] : memref<320x320xbf16, #tpu.memory_space<vmem>>, vector<320x320xbf16>
    %c0_1 = arith.constant 0 : index
    %c0_2 = arith.constant 0 : index
    %1 = vector.load %arg1[%c0_1, %c0_2] : memref<320x256xf32, #tpu.memory_space<vmem>>, vector<320x256xf32>
    %2 = arith.truncf %1 : vector<320x256xf32> to vector<320x256xbf16>
    %cst = arith.constant dense<0.000000e+00> : vector<320x256xf32>
    %3 = tpu.matmul %0, %2, %cst {dimension_numbers = #tpu.dot_dimension_numbers<[1], [0], [0], [1], [0, 0, 1, 1], [], []>} : vector<320x320xbf16>, vector<320x256xbf16>, vector<320x256xf32> -> vector<320x256xf32>
    %cst_3 = arith.constant dense<0.000000e+00> : vector<320xf32>
    %4 = vector.multi_reduction <add>, %3, %cst_3 [1] : vector<320x256xf32> to vector<320xf32>
    %5 = vector.shape_cast %4 : vector<320xf32> to vector<320x1xf32>
    %cst_4 = arith.constant 0.00510204071 : f32
    %6 = vector.broadcast %cst_4 : f32 to vector<320x1xf32>
    %7 = arith.mulf %5, %6 : vector<320x1xf32>
    %8 = tpu.iota {dimensions = array<i32: 1>} : vector<1x256xi32>
    %c196_i32 = arith.constant 196 : i32
    %9 = vector.broadcast %c196_i32 : i32 to vector<1x256xi32>
    %10 = arith.cmpi slt, %8, %9 : vector<1x256xi32>
    %11 = vector.broadcast %7 : vector<320x1xf32> to vector<320x256xf32>
    %12 = arith.subf %3, %11 : vector<320x256xf32>
    %cst_5 = arith.constant 0.000000e+00 : f32
    %13 = vector.shape_cast %10 : vector<1x256xi1> to vector<1x256xi1>
    %14 = vector.broadcast %13 : vector<1x256xi1> to vector<320x256xi1>
    %15 = vector.broadcast %cst_5 : f32 to vector<320x256xf32>
    %16 = arith.select %14, %12, %15 : vector<320x256xi1>, vector<320x256xf32>
    %17 = arith.mulf %16, %16 : vector<320x256xf32>
    %cst_6 = arith.constant dense<0.000000e+00> : vector<320xf32>
    %18 = vector.multi_reduction <add>, %17, %cst_6 [1] : vector<320x256xf32> to vector<320xf32>
    %19 = vector.shape_cast %18 : vector<320xf32> to vector<320x1xf32>
    %cst_7 = arith.constant 0.00510204071 : f32
    %20 = vector.broadcast %cst_7 : f32 to vector<320x1xf32>
    %21 = arith.mulf %19, %20 : vector<320x1xf32>
    %c0_8 = arith.constant 0 : index
    %c0_9 = arith.constant 0 : index
    %22 = vector.load %arg3[%c0_8, %c0_9] : memref<320x1xf32, #tpu.memory_space<vmem>>, vector<320x1xf32>
    %cst_10 = arith.constant 9.99999974E-6 : f32
    %23 = vector.broadcast %cst_10 : f32 to vector<320x1xf32>
    %24 = arith.addf %21, %23 : vector<320x1xf32>
    %25 = math.rsqrt %24 : vector<320x1xf32>
    %26 = arith.mulf %22, %25 : vector<320x1xf32>
    %c0_11 = arith.constant 0 : index
    %c0_12 = arith.constant 0 : index
    %27 = vector.load %arg4[%c0_11, %c0_12] : memref<320x1xf32, #tpu.memory_space<vmem>>, vector<320x1xf32>
    %28 = arith.mulf %7, %26 : vector<320x1xf32>
    %29 = arith.subf %27, %28 : vector<320x1xf32>
    %30 = vector.broadcast %26 : vector<320x1xf32> to vector<320x256xf32>
    %31 = arith.mulf %3, %30 : vector<320x256xf32>
    %32 = vector.broadcast %29 : vector<320x1xf32> to vector<320x256xf32>
    %33 = arith.addf %31, %32 : vector<320x256xf32>
    %cst_13 = arith.constant 0.000000e+00 : f32
    %34 = vector.broadcast %cst_13 : f32 to vector<320x256xf32>
    %35 = arith.maximumf %33, %34 : vector<320x256xf32>
    %c0_14 = arith.constant 0 : index
    %c0_15 = arith.constant 0 : index
    %36 = vector.load %arg5[%c0_14, %c0_15] : memref<320x256xf32, #tpu.memory_space<vmem>>, vector<320x256xf32>
    tpu.vector_store %arg5[%c0_14, %c0_15], %35 {strides = array<i32>} : memref<320x256xf32, #tpu.memory_space<vmem>>, vector<320x256xf32>,
    return
  }
  func.func @transform_0(%arg0: i32) -> (i32, i32) {
    %c0_i32 = arith.constant 0 : i32
    %c0_i32_0 = arith.constant 0 : i32
    %c0_i32_1 = arith.constant 0 : i32
    return %c0_i32, %c0_i32_0 : i32, i32
  }
  func.func @transform_1(%arg0: i32) -> (i32, i32) {
    %c0_i32 = arith.constant 0 : i32
    %c0_i32_0 = arith.constant 0 : i32
    %c0_i32_1 = arith.constant 0 : i32
    return %c0_i32, %c0_i32_0 : i32, i32
  }
  func.func @transform_2(%arg0: i32) -> (i32, i32) {
    %c0_i32 = arith.constant 0 : i32
    %c0_i32_0 = arith.constant 0 : i32
    %c0_i32_1 = arith.constant 0 : i32
    return %c0_i32, %c0_i32_0 : i32, i32
  }
  func.func @transform_3(%arg0: i32) -> (i32, i32) {
    %c0_i32 = arith.constant 0 : i32
    %c0_i32_0 = arith.constant 0 : i32
    %c0_i32_1 = arith.constant 0 : i32
    return %c0_i32, %c0_i32_0 : i32, i32
  }
  func.func @transform_4(%arg0: i32) -> (i32, i32) {
    %c0_i32 = arith.constant 0 : i32
    %c0_i32_0 = arith.constant 0 : i32
    %c0_i32_1 = arith.constant 0 : i32
    return %c0_i32, %c0_i32_0 : i32, i32
  }
}

</mosaic_0001>

<llo_original>
// kernel: tpu_custom_call.1
$region0: #{tpu_custom_call.1}
  #allocation0 [shape = 'u32[]', space=smem, size = 0x4, offset = 0x4, fixed_abs, tag = 'smem constant byte address 0x4 - core index']
  #allocation1 [shape = 'u32[144,128]{1,0:T(1,128)}', space=vmem, size = 0x12000, scoped, tag = 'internal scratch']
  %s0 = inlined_call_operand.vmem [shape: f32[320,256], index: 0, kind: input, shape index: {}]
  %s1 = inlined_call_operand.hbm [shape: bf16[320,320], index: 1, kind: input, shape index: {}]
  %s2 = inlined_call_operand.vmem [shape: f32[320,1], index: 2, kind: input, shape index: {}]
  %s3 = inlined_call_operand.vmem [shape: f32[320,1], index: 3, kind: input, shape index: {}]
  %s4 = inlined_call_operand.hbm [shape: f32[320,256], index: 4, kind: output, shape index: {}]
  %s5 = sld [smem:[#allocation0]]
  $region30: #{tpu_custom_call.1} parent=0
    _
  %s7 = ssub.s32 1, %s5
  %s8 = scalar_select 0, %s7, %s5
  $region1: #{tpu_custom_call.1} parent=0
    #allocation2 [shape = 'u8[245760]{0}', space=vmem, size = 0x3c000, scoped, tag = 'input window, operand 1, single buffered']
    #allocation3 [shape = 's32[1]{0}', space=sflag, size = 0x4, scoped, tag = 'scoped memory for tpu_custom_call.1']
    #allocation4 [shape = 's32[1]{0}', space=sflag, size = 0x4, scoped, tag = 'scoped memory for tpu_custom_call.1']
    #allocation5 [shape = 'u8[327680]{0}', space=vmem, size = 0x50000, scoped, tag = 'output window, operand 0, single buffered']
    %9 = vsyncpa [#allocation3], 0
    %10 = vsyncpa [#allocation4], 0
    // Predicated region
    $region2: #{tpu_custom_call.1} parent=1 // pred_check
      _
    $region3: #{tpu_custom_call.1} parent=1 // pred_check_branch
      %12 = sbr.rel (0) target = $region5
    $region4: #{tpu_custom_call.1} parent=1 // pred_region
      _
    $region5: #{tpu_custom_call.1} parent=1 // pred_fallthru
      _
    // Predicated region
    $region6: #{tpu_custom_call.1} parent=1 // pred_check
      _
    $region7: #{tpu_custom_call.1} parent=1 // pred_check_branch
      %14 = sbr.rel (0) target = $region9
    $region8: #{tpu_custom_call.1} parent=1 // pred_region
      %s16 = ssub.s32 7680, 7680
      %17 = vsyncadd [#allocation3], %s16
      %s18 = sshll.u32 [#allocation2], 4
      %s19 = int_to_ptr.vmem [resolvable:$true] %s18
      %24 = dma.hbm_to_vmem [thread:$0]  %s1, 7680, %s19, [#allocation3], 192, 192, 12
    $region9: #{tpu_custom_call.1} parent=1 // pred_fallthru
      _
    // Predicated region
    $region10: #{tpu_custom_call.1} parent=1 // pred_check
      _
    $region11: #{tpu_custom_call.1} parent=1 // pred_check_branch
      %26 = sbr.rel (0) target = $region13
    $region12: #{tpu_custom_call.1} parent=1 // pred_region
      _
    $region13: #{tpu_custom_call.1} parent=1 // pred_fallthru
      _
    // Predicated region
    $region14: #{tpu_custom_call.1} parent=1 // pred_check
      _
    $region15: #{tpu_custom_call.1} parent=1 // pred_check_branch
      %28 = sbr.rel (0) target = $region17
    $region16: #{tpu_custom_call.1} parent=1 // pred_region
      _
    $region17: #{tpu_custom_call.1} parent=1 // pred_fallthru
      _
    // Predicated region
    $region18: #{tpu_custom_call.1} parent=1 // pred_check
      _
    $region19: #{tpu_custom_call.1} parent=1 // pred_check_branch
      %30 = sbr.rel (0) target = $region21
    $region20: #{tpu_custom_call.1} parent=1 // pred_region
      %31 = dma.done [#allocation3], 7680
    $region21: #{tpu_custom_call.1} parent=1 // pred_fallthru
      _
    %v33 = vld [vmem:[#allocation2] sm:$0xff]
    %v34 = vld [vmem:[#allocation2 + $0x8] sm:$0xf]
    %v35 = vld [vmem:[#allocation2 + $0xc] sm:$0xff]
    %v36 = vld [vmem:[#allocation2 + $0x14] sm:$0xf]
    %v37 = vld [vmem:[#allocation2 + $0x18] sm:$0xff]
    %v38 = vld [vmem:[#allocation2 + $0x20] sm:$0xf]
    %v39 = vld [vmem:[#allocation2 + $0x24] sm:$0xff]
    %v40 = vld [vmem:[#allocation2 + $0x2c] sm:$0xf]
    %v41 = vld [vmem:[#allocation2 + $0x30] sm:$0xff]
    %v42 = vld [vmem:[#allocation2 + $0x38] sm:$0xf]
    %v43 = vld [vmem:[#allocation2 + $0x3c] sm:$0xff]
    %v44 = vld [vmem:[#allocation2 + $0x44] sm:$0xf]
    %v45 = vld [vmem:[#allocation2 + $0x48] sm:$0xff]
    %v46 = vld [vmem:[#allocation2 + $0x50] sm:$0xf]
    %v47 = vld [vmem:[#allocation2 + $0x54] sm:$0xff]
    %v48 = vld [vmem:[#allocation2 + $0x5c] sm:$0xf]
    %v49 = vld [vmem:[#allocation2 + $0x60] sm:$0xff]
    %v50 = vld [vmem:[#allocation2 + $0x68] sm:$0xf]
    %v51 = vld [vmem:[#allocation2 + $0x6c] sm:$0xff]
    %v52 = vld [vmem:[#allocation2 + $0x74] sm:$0xf]
    %v53 = vld [vmem:[#allocation2 + $0x78] sm:$0xff]
    %v54 = vld [vmem:[#allocation2 + $0x80] sm:$0xf]
    %v55 = vld [vmem:[#allocation2 + $0x84] sm:$0xff]
    %v56 = vld [vmem:[#allocation2 + $0x8c] sm:$0xf]
    %v57 = vld [vmem:[#allocation2 + $0x90] sm:$0xff]
    %v58 = vld [vmem:[#allocation2 + $0x98] sm:$0xf]
    %v59 = vld [vmem:[#allocation2 + $0x9c] sm:$0xff]
    %v60 = vld [vmem:[#allocation2 + $0xa4] sm:$0xf]
    %v61 = vld [vmem:[#allocation2 + $0xa8] sm:$0xff]
    %v62 = vld [vmem:[#allocation2 + $0xb0] sm:$0xf]
    %v63 = vld [vmem:[#allocation2 + $0xb4] sm:$0xff]
    %v64 = vld [vmem:[#allocation2 + $0xbc] sm:$0xf]
    %v65 = vld [vmem:[#allocation2 + $0xc0] sm:$0xff]
    %v66 = vld [vmem:[#allocation2 + $0xc8] sm:$0xf]
    %v67 = vld [vmem:[#allocation2 + $0xcc] sm:$0xff]
    %v68 = vld [vmem:[#allocation2 + $0xd4] sm:$0xf]
    %v69 = vld [vmem:[#allocation2 + $0xd8] sm:$0xff]
    %v70 = vld [vmem:[#allocation2 + $0xe0] sm:$0xf]
    %v71 = vld [vmem:[#allocation2 + $0xe4] sm:$0xff]
    %v72 = vld [vmem:[#allocation2 + $0xec] sm:$0xf]
    %v73 = vld [vmem:[#allocation2 + $0xf0] sm:$0xff]
    %v74 = vld [vmem:[#allocation2 + $0xf8] sm:$0xf]
    %v75 = vld [vmem:[#allocation2 + $0xfc] sm:$0xff]
    %v76 = vld [vmem:[#allocation2 + $0x104] sm:$0xf]
    %v77 = vld [vmem:[#allocation2 + $0x108] sm:$0xff]
    %v78 = vld [vmem:[#allocation2 + $0x110] sm:$0xf]
    %v79 = vld [vmem:[#allocation2 + $0x114] sm:$0xff]
    %v80 = vld [vmem:[#allocation2 + $0x11c] sm:$0xf]
    %v81 = vld [vmem:[#allocation2 + $0x120] sm:$0xff]
    %v82 = vld [vmem:[#allocation2 + $0x128] sm:$0xf]
    %v83 = vld [vmem:[#allocation2 + $0x12c] sm:$0xff]
    %v84 = vld [vmem:[#allocation2 + $0x134] sm:$0xf]
    %v85 = vld [vmem:[#allocation2 + $0x138] sm:$0xff]
    %v86 = vld [vmem:[#allocation2 + $0x140] sm:$0xf]
    %v87 = vld [vmem:[#allocation2 + $0x144] sm:$0xff]
    %v88 = vld [vmem:[#allocation2 + $0x14c] sm:$0xf]
    %v89 = vld [vmem:[#allocation2 + $0x150] sm:$0xff]
    %v90 = vld [vmem:[#allocation2 + $0x158] sm:$0xf]
    %v91 = vld [vmem:[#allocation2 + $0x15c] sm:$0xff]
    %v92 = vld [vmem:[#allocation2 + $0x164] sm:$0xf]
    %v93 = vld [vmem:[#allocation2 + $0x168] sm:$0xff]
    %v94 = vld [vmem:[#allocation2 + $0x170] sm:$0xf]
    %v95 = vld [vmem:[#allocation2 + $0x174] sm:$0xff]
    %v96 = vld [vmem:[#allocation2 + $0x17c] sm:$0xf]
    %v97 = vld [vmem:[#allocation2 + $0x180] sm:$0xff]
    %v98 = vld [vmem:[#allocation2 + $0x188] sm:$0xf]
    %v99 = vld [vmem:[#allocation2 + $0x18c] sm:$0xff]
    %v100 = vld [vmem:[#allocation2 + $0x194] sm:$0xf]
    %v101 = vld [vmem:[#allocation2 + $0x198] sm:$0xff]
    %v102 = vld [vmem:[#allocation2 + $0x1a0] sm:$0xf]
    %v103 = vld [vmem:[#allocation2 + $0x1a4] sm:$0xff]
    %v104 = vld [vmem:[#allocation2 + $0x1ac] sm:$0xf]
    %v105 = vld [vmem:[#allocation2 + $0x1b0] sm:$0xff]
    %v106 = vld [vmem:[#allocation2 + $0x1b8] sm:$0xf]
    %v107 = vld [vmem:[#allocation2 + $0x1bc] sm:$0xff]
    %v108 = vld [vmem:[#allocation2 + $0x1c4] sm:$0xf]
    %v109 = vld [vmem:[#allocation2 + $0x1c8] sm:$0xff]
    %v110 = vld [vmem:[#allocation2 + $0x1d0] sm:$0xf]
    %v111 = vld [vmem:[#allocation2 + $0x1d4] sm:$0xff]
    %v112 = vld [vmem:[#allocation2 + $0x1dc] sm:$0xf]
    %v113 = vld [vmem:[%s0] sm:$0xff]
    %v114 = vld [vmem:[%s0 + $0x8] sm:$0xff]
    %v115 = vld [vmem:[%s0 + $0x10] sm:$0xff]
    %v116 = vld [vmem:[%s0 + $0x18] sm:$0xff]
    %v117 = vld [vmem:[%s0 + $0x20] sm:$0xff]
    %v118 = vld [vmem:[%s0 + $0x28] sm:$0xff]
    %v119 = vld [vmem:[%s0 + $0x30] sm:$0xff]
    %v120 = vld [vmem:[%s0 + $0x38] sm:$0xff]
    %v121 = vld [vmem:[%s0 + $0x40] sm:$0xff]
    %v122 = vld [vmem:[%s0 + $0x48] sm:$0xff]
    %v123 = vld [vmem:[%s0 + $0x50] sm:$0xff]
    %v124 = vld [vmem:[%s0 + $0x58] sm:$0xff]
    %v125 = vld [vmem:[%s0 + $0x60] sm:$0xff]
    %v126 = vld [vmem:[%s0 + $0x68] sm:$0xff]
    %v127 = vld [vmem:[%s0 + $0x70] sm:$0xff]
    %v128 = vld [vmem:[%s0 + $0x78] sm:$0xff]
    %v129 = vld [vmem:[%s0 + $0x80] sm:$0xff]
    %v130 = vld [vmem:[%s0 + $0x88] sm:$0xff]
    %v131 = vld [vmem:[%s0 + $0x90] sm:$0xff]
    %v132 = vld [vmem:[%s0 + $0x98] sm:$0xff]
    %v133 = vld [vmem:[%s0 + $0xa0] sm:$0xff]
    %v134 = vld [vmem:[%s0 + $0xa8] sm:$0xff]
    %v135 = vld [vmem:[%s0 + $0xb0] sm:$0xff]
    %v136 = vld [vmem:[%s0 + $0xb8] sm:$0xff]
    %v137 = vld [vmem:[%s0 + $0xc0] sm:$0xff]
    %v138 = vld [vmem:[%s0 + $0xc8] sm:$0xff]
    %v139 = vld [vmem:[%s0 + $0xd0] sm:$0xff]
    %v140 = vld [vmem:[%s0 + $0xd8] sm:$0xff]
    %v141 = vld [vmem:[%s0 + $0xe0] sm:$0xff]
    %v142 = vld [vmem:[%s0 + $0xe8] sm:$0xff]
    %v143 = vld [vmem:[%s0 + $0xf0] sm:$0xff]
    %v144 = vld [vmem:[%s0 + $0xf8] sm:$0xff]
    %v145 = vld [vmem:[%s0 + $0x100] sm:$0xff]
    %v146 = vld [vmem:[%s0 + $0x108] sm:$0xff]
    %v147 = vld [vmem:[%s0 + $0x110] sm:$0xff]
    %v148 = vld [vmem:[%s0 + $0x118] sm:$0xff]
    %v149 = vld [vmem:[%s0 + $0x120] sm:$0xff]
    %v150 = vld [vmem:[%s0 + $0x128] sm:$0xff]
    %v151 = vld [vmem:[%s0 + $0x130] sm:$0xff]
    %v152 = vld [vmem:[%s0 + $0x138] sm:$0xff]
    %v153 = vld [vmem:[%s0 + $0x140] sm:$0xff]
    %v154 = vld [vmem:[%s0 + $0x148] sm:$0xff]
    %v155 = vld [vmem:[%s0 + $0x150] sm:$0xff]
    %v156 = vld [vmem:[%s0 + $0x158] sm:$0xff]
    %v157 = vld [vmem:[%s0 + $0x160] sm:$0xff]
    %v158 = vld [vmem:[%s0 + $0x168] sm:$0xff]
    %v159 = vld [vmem:[%s0 + $0x170] sm:$0xff]
    %v160 = vld [vmem:[%s0 + $0x178] sm:$0xff]
    %v161 = vld [vmem:[%s0 + $0x180] sm:$0xff]
    %v162 = vld [vmem:[%s0 + $0x188] sm:$0xff]
    %v163 = vld [vmem:[%s0 + $0x190] sm:$0xff]
    %v164 = vld [vmem:[%s0 + $0x198] sm:$0xff]
    %v165 = vld [vmem:[%s0 + $0x1a0] sm:$0xff]
    %v166 = vld [vmem:[%s0 + $0x1a8] sm:$0xff]
    %v167 = vld [vmem:[%s0 + $0x1b0] sm:$0xff]
    %v168 = vld [vmem:[%s0 + $0x1b8] sm:$0xff]
    %v169 = vld [vmem:[%s0 + $0x1c0] sm:$0xff]
    %v170 = vld [vmem:[%s0 + $0x1c8] sm:$0xff]
    %v171 = vld [vmem:[%s0 + $0x1d0] sm:$0xff]
    %v172 = vld [vmem:[%s0 + $0x1d8] sm:$0xff]
    %v173 = vld [vmem:[%s0 + $0x1e0] sm:$0xff]
    %v174 = vld [vmem:[%s0 + $0x1e8] sm:$0xff]
    %v175 = vld [vmem:[%s0 + $0x1f0] sm:$0xff]
    %v176 = vld [vmem:[%s0 + $0x1f8] sm:$0xff]
    %v177 = vld [vmem:[%s0 + $0x200] sm:$0xff]
    %v178 = vld [vmem:[%s0 + $0x208] sm:$0xff]
    %v179 = vld [vmem:[%s0 + $0x210] sm:$0xff]
    %v180 = vld [vmem:[%s0 + $0x218] sm:$0xff]
    %v181 = vld [vmem:[%s0 + $0x220] sm:$0xff]
    %v182 = vld [vmem:[%s0 + $0x228] sm:$0xff]
    %v183 = vld [vmem:[%s0 + $0x230] sm:$0xff]
    %v184 = vld [vmem:[%s0 + $0x238] sm:$0xff]
    %v185 = vld [vmem:[%s0 + $0x240] sm:$0xff]
    %v186 = vld [vmem:[%s0 + $0x248] sm:$0xff]
    %v187 = vld [vmem:[%s0 + $0x250] sm:$0xff]
    %v188 = vld [vmem:[%s0 + $0x258] sm:$0xff]
    %v189 = vld [vmem:[%s0 + $0x260] sm:$0xff]
    %v190 = vld [vmem:[%s0 + $0x268] sm:$0xff]
    %v191 = vld [vmem:[%s0 + $0x270] sm:$0xff]
    %v192 = vld [vmem:[%s0 + $0x278] sm:$0xff]
    %v193 = vpack.c.bf16 %v115, %v113
    %v194 = vpack.c.bf16 %v116, %v114
    %v195 = vpack.c.bf16 %v119, %v117
    %v196 = vpack.c.bf16 %v120, %v118
    %v197 = vpack.c.bf16 %v123, %v121
    %v198 = vpack.c.bf16 %v124, %v122
    %v199 = vpack.c.bf16 %v127, %v125
    %v200 = vpack.c.bf16 %v128, %v126
    %v201 = vpack.c.bf16 %v131, %v129
    %v202 = vpack.c.bf16 %v132, %v130
    %v203 = vpack.c.bf16 %v135, %v133
    %v204 = vpack.c.bf16 %v136, %v134
    %v205 = vpack.c.bf16 %v139, %v137
    %v206 = vpack.c.bf16 %v140, %v138
    %v207 = vpack.c.bf16 %v143, %v141
    %v208 = vpack.c.bf16 %v144, %v142
    %v209 = vpack.c.bf16 %v147, %v145
    %v210 = vpack.c.bf16 %v148, %v146
    %v211 = vpack.c.bf16 %v151, %v149
    %v212 = vpack.c.bf16 %v152, %v150
    %v213 = vpack.c.bf16 %v155, %v153
    %v214 = vpack.c.bf16 %v156, %v154
    %v215 = vpack.c.bf16 %v159, %v157
    %v216 = vpack.c.bf16 %v160, %v158
    %v217 = vpack.c.bf16 %v163, %v161
    %v218 = vpack.c.bf16 %v164, %v162
    %v219 = vpack.c.bf16 %v167, %v165
    %v220 = vpack.c.bf16 %v168, %v166
    %v221 = vpack.c.bf16 %v171, %v169
    %v222 = vpack.c.bf16 %v172, %v170
    %v223 = vpack.c.bf16 %v175, %v173
    %v224 = vpack.c.bf16 %v176, %v174
    %v225 = vpack.c.bf16 %v179, %v177
    %v226 = vpack.c.bf16 %v180, %v178
    %v227 = vpack.c.bf16 %v183, %v181
    %v228 = vpack.c.bf16 %v184, %v182
    %v229 = vpack.c.bf16 %v187, %v185
    %v230 = vpack.c.bf16 %v188, %v186
    %v231 = vpack.c.bf16 %v191, %v189
    %v232 = vpack.c.bf16 %v192, %v190
    %v313 = vunpack.c.l.b16 %v33
    %v314 = vunpack.c.h.b16 %v33
    %v315 = vunpack.c.l.b16 %v34
    %v316 = vunpack.c.l.b16 %v35
    %v317 = vunpack.c.h.b16 %v35
    %v318 = vunpack.c.l.b16 %v36
    %v319 = vunpack.c.l.b16 %v37
    %v320 = vunpack.c.h.b16 %v37
    %v321 = vunpack.c.l.b16 %v38
    %v322 = vunpack.c.l.b16 %v39
    %v323 = vunpack.c.h.b16 %v39
    %v324 = vunpack.c.l.b16 %v40
    %v325 = vunpack.c.l.b16 %v41
    %v326 = vunpack.c.h.b16 %v41
    %v327 = vunpack.c.l.b16 %v42
    %v328 = vunpack.c.l.b16 %v43
    %v329 = vunpack.c.h.b16 %v43
    %v330 = vunpack.c.l.b16 %v44
    %v331 = vunpack.c.l.b16 %v45
    %v332 = vunpack.c.h.b16 %v45
    %v333 = vunpack.c.l.b16 %v46
    %v334 = vunpack.c.l.b16 %v47
    %v335 = vunpack.c.h.b16 %v47
    %v336 = vunpack.c.l.b16 %v48
    %v337 = vunpack.c.l.b16 %v49
    %v338 = vunpack.c.h.b16 %v49
    %v339 = vunpack.c.l.b16 %v50
    %v340 = vunpack.c.l.b16 %v51
    %v341 = vunpack.c.h.b16 %v51
    %v342 = vunpack.c.l.b16 %v52
    %v343 = vunpack.c.l.b16 %v53
    %v344 = vunpack.c.h.b16 %v53
    %v345 = vunpack.c.l.b16 %v54
    %v346 = vunpack.c.l.b16 %v55
    %v347 = vunpack.c.h.b16 %v55
    %v348 = vunpack.c.l.b16 %v56
    %v349 = vunpack.c.l.b16 %v57
    %v350 = vunpack.c.h.b16 %v57
    %v351 = vunpack.c.l.b16 %v58
    %v352 = vunpack.c.l.b16 %v59
    %v353 = vunpack.c.h.b16 %v59
    %v354 = vunpack.c.l.b16 %v60
    %v355 = vunpack.c.l.b16 %v61
    %v356 = vunpack.c.h.b16 %v61
    %v357 = vunpack.c.l.b16 %v62
    %v358 = vunpack.c.l.b16 %v63
    %v359 = vunpack.c.h.b16 %v63
    %v360 = vunpack.c.l.b16 %v64
    %v361 = vunpack.c.l.b16 %v65
    %v362 = vunpack.c.h.b16 %v65
    %v363 = vunpack.c.l.b16 %v66
    %v364 = vunpack.c.l.b16 %v67
    %v365 = vunpack.c.h.b16 %v67
    %v366 = vunpack.c.l.b16 %v68
    %v367 = vunpack.c.l.b16 %v69
    %v368 = vunpack.c.h.b16 %v69
    %v369 = vunpack.c.l.b16 %v70
    %v370 = vunpack.c.l.b16 %v71
    %v371 = vunpack.c.h.b16 %v71
    %v372 = vunpack.c.l.b16 %v72
    %v373 = vunpack.c.l.b16 %v73
    %v374 = vunpack.c.h.b16 %v73
    %v375 = vunpack.c.l.b16 %v74
    %v376 = vunpack.c.l.b16 %v75
    %v377 = vunpack.c.h.b16 %v75
    %v378 = vunpack.c.l.b16 %v76
    %v379 = vunpack.c.l.b16 %v77
    %v380 = vunpack.c.h.b16 %v77
    %v381 = vunpack.c.l.b16 %v78
    %v382 = vunpack.c.l.b16 %v79
    %v383 = vunpack.c.h.b16 %v79
    %v384 = vunpack.c.l.b16 %v80
    %v385 = vunpack.c.l.b16 %v81
    %v386 = vunpack.c.h.b16 %v81
    %v387 = vunpack.c.l.b16 %v82
    %v388 = vunpack.c.l.b16 %v83
    %v389 = vunpack.c.h.b16 %v83
    %v390 = vunpack.c.l.b16 %v84
    %v391 = vunpack.c.l.b16 %v85
    %v392 = vunpack.c.h.b16 %v85
    %v393 = vunpack.c.l.b16 %v86
    %v394 = vunpack.c.l.b16 %v87
    %v395 = vunpack.c.h.b16 %v87
    %v396 = vunpack.c.l.b16 %v88
    %v397 = vunpack.c.l.b16 %v89
    %v398 = vunpack.c.h.b16 %v89
    %v399 = vunpack.c.l.b16 %v90
    %v400 = vunpack.c.l.b16 %v91
    %v401 = vunpack.c.h.b16 %v91
    %v402 = vunpack.c.l.b16 %v92
    %v403 = vunpack.c.l.b16 %v93
    %v404 = vunpack.c.h.b16 %v93
    %v405 = vunpack.c.l.b16 %v94
    %v406 = vunpack.c.l.b16 %v95
    %v407 = vunpack.c.h.b16 %v95
    %v408 = vunpack.c.l.b16 %v96
    %v409 = vunpack.c.l.b16 %v97
    %v410 = vunpack.c.h.b16 %v97
    %v411 = vunpack.c.l.b16 %v98
    %v412 = vunpack.c.l.b16 %v99
    %v413 = vunpack.c.h.b16 %v99
    %v414 = vunpack.c.l.b16 %v100
    %v415 = vunpack.c.l.b16 %v101
    %v416 = vunpack.c.h.b16 %v101
    %v417 = vunpack.c.l.b16 %v102
    %v418 = vunpack.c.l.b16 %v103
    %v419 = vunpack.c.h.b16 %v103
    %v420 = vunpack.c.l.b16 %v104
    %v421 = vunpack.c.l.b16 %v105
    %v422 = vunpack.c.h.b16 %v105
    %v423 = vunpack.c.l.b16 %v106
    %v424 = vunpack.c.l.b16 %v107
    %v425 = vunpack.c.h.b16 %v107
    %v426 = vunpack.c.l.b16 %v108
    %v427 = vunpack.c.l.b16 %v109
    %v428 = vunpack.c.h.b16 %v109
    %v429 = vunpack.c.l.b16 %v110
    %v430 = vunpack.c.l.b16 %v111
    %v431 = vunpack.c.h.b16 %v111
    %v432 = vunpack.c.l.b16 %v112
    %v433 = vpack.c.b16 %v316, %v313
    %v434 = vpack.c.b16 %v317, %v314
    %v435 = vpack.c.b16 %v318, %v315
    %v436 = vpack.c.b16 %v322, %v319
    %v437 = vpack.c.b16 %v323, %v320
    %v438 = vpack.c.b16 %v324, %v321
    %v439 = vpack.c.b16 %v328, %v325
    %v440 = vpack.c.b16 %v329, %v326
    %v441 = vpack.c.b16 %v330, %v327
    %v442 = vpack.c.b16 %v334, %v331
    %v443 = vpack.c.b16 %v335, %v332
    %v444 = vpack.c.b16 %v336, %v333
    %v445 = vpack.c.b16 %v340, %v337
    %v446 = vpack.c.b16 %v341, %v338
    %v447 = vpack.c.b16 %v342, %v339
    %v448 = vpack.c.b16 %v346, %v343
    %v449 = vpack.c.b16 %v347, %v344
    %v450 = vpack.c.b16 %v348, %v345
    %v451 = vpack.c.b16 %v352, %v349
    %v452 = vpack.c.b16 %v353, %v350
    %v453 = vpack.c.b16 %v354, %v351
    %v454 = vpack.c.b16 %v358, %v355
    %v455 = vpack.c.b16 %v359, %v356
    %v456 = vpack.c.b16 %v360, %v357
    %v457 = vpack.c.b16 %v364, %v361
    %v458 = vpack.c.b16 %v365, %v362
    %v459 = vpack.c.b16 %v366, %v363
    %v460 = vpack.c.b16 %v370, %v367
    %v461 = vpack.c.b16 %v371, %v368
    %v462 = vpack.c.b16 %v372, %v369
    %v463 = vpack.c.b16 %v376, %v373
    %v464 = vpack.c.b16 %v377, %v374
    %v465 = vpack.c.b16 %v378, %v375
    %v466 = vpack.c.b16 %v382, %v379
    %v467 = vpack.c.b16 %v383, %v380
    %v468 = vpack.c.b16 %v384, %v381
    %v469 = vpack.c.b16 %v388, %v385
    %v470 = vpack.c.b16 %v389, %v386
    %v471 = vpack.c.b16 %v390, %v387
    %v472 = vpack.c.b16 %v394, %v391
    %v473 = vpack.c.b16 %v395, %v392
    %v474 = vpack.c.b16 %v396, %v393
    %v475 = vpack.c.b16 %v400, %v397
    %v476 = vpack.c.b16 %v401, %v398
    %v477 = vpack.c.b16 %v402, %v399
    %v478 = vpack.c.b16 %v406, %v403
    %v479 = vpack.c.b16 %v407, %v404
    %v480 = vpack.c.b16 %v408, %v405
    %v481 = vpack.c.b16 %v412, %v409
    %v482 = vpack.c.b16 %v413, %v410
    %v483 = vpack.c.b16 %v414, %v411
    %v484 = vpack.c.b16 %v418, %v415
    %v485 = vpack.c.b16 %v419, %v416
    %v486 = vpack.c.b16 %v420, %v417
    %v487 = vpack.c.b16 %v424, %v421
    %v488 = vpack.c.b16 %v425, %v422
    %v489 = vpack.c.b16 %v426, %v423
    %v490 = vpack.c.b16 %v430, %v427
    %v491 = vpack.c.b16 %v431, %v428
    %v492 = vpack.c.b16 %v432, %v429
    %vm533 = vcmask 523264
    %v535 = vsel %vm533, %v435, 0
    %v538 = vsel %vm533, %v438, 0
    %v541 = vsel %vm533, %v441, 0
    %v544 = vsel %vm533, %v444, 0
    %v547 = vsel %vm533, %v447, 0
    %v550 = vsel %vm533, %v450, 0
    %v553 = vsel %vm533, %v453, 0
    %v556 = vsel %vm533, %v456, 0
    %v559 = vsel %vm533, %v459, 0
    %v562 = vsel %vm533, %v462, 0
    %v565 = vsel %vm533, %v465, 0
    %v568 = vsel %vm533, %v468, 0
    %v571 = vsel %vm533, %v471, 0
    %v574 = vsel %vm533, %v474, 0
    %v577 = vsel %vm533, %v477, 0
    %v580 = vsel %vm533, %v480, 0
    %v583 = vsel %vm533, %v483, 0
    %v586 = vsel %vm533, %v486, 0
    %v589 = vsel %vm533, %v489, 0
    %v592 = vsel %vm533, %v492, 0
    %594 = vmatprep.subr.bf16.mxu0 %v194
    %595 = vmatpush1.bf16.msra.mxu0 %v193
    %596 = vmatprep.subr.bf16.mxu0 %v196
    %597 = vmatpush1.bf16.msra.mxu0 %v195
    %598 = vmatprep.subr.bf16.mxu0 %v198
    %599 = vmatpush1.bf16.msra.mxu0 %v197
    %600 = vmatprep.subr.bf16.mxu0 %v200
    %601 = vmatpush1.bf16.msra.mxu0 %v199
    %602 = vmatprep.subr.bf16.mxu0 %v202
    %603 = vmatpush1.bf16.msra.mxu0 %v201
    %604 = vmatprep.subr.bf16.mxu0 %v204
    %605 = vmatpush1.bf16.msra.mxu0 %v203
    %606 = vmatprep.subr.bf16.mxu0 %v206
    %607 = vmatpush1.bf16.msra.mxu0 %v205
    %608 = vmatprep.subr.bf16.mxu0 %v208
    %609 = vmatpush1.bf16.msra.mxu0 %v207
    %610 = vmatprep.subr.bf16.mxu0 %v210
    %611 = vmatpush1.bf16.msra.mxu0 %v209
    %612 = vmatprep.subr.bf16.mxu0 %v212
    %613 = vmatpush1.bf16.msra.mxu0 %v211
    %614 = vmatprep.subr.bf16.mxu0 %v214
    %615 = vmatpush1.bf16.msra.mxu0 %v213
    %616 = vmatprep.subr.bf16.mxu0 %v216
    %617 = vmatpush1.bf16.msra.mxu0 %v215
    %618 = vmatprep.subr.bf16.mxu0 %v218
    %619 = vmatpush1.bf16.msra.mxu0 %v217
    %620 = vmatprep.subr.bf16.mxu0 %v220
    %621 = vmatpush1.bf16.msra.mxu0 %v219
    %622 = vmatprep.subr.bf16.mxu0 %v222
    %623 = vmatpush1.bf16.msra.mxu0 %v221
    %624 = vmatprep.subr.bf16.mxu0 %v224
    %625 = vmatpush1.bf16.msra.mxu0 %v223
    %626 = vmatprep.mubr.bf16.mxu0 %v434
    %627 = vmatmul.mubr.bf16.gmra.mrb[0].mxu0 %v433
    %v628 = vpop.f32.mrb[0].mxu0
    %v629 = vadd.f32 0.0, %v628
    %v630 = vpop.f32.mrb[0].mxu0
    %v631 = vadd.f32 0.0, %v630
    %v632 = vpop.f32.mrb[0].mxu0
    %v633 = vadd.f32 0.0, %v632
    %v634 = vpop.f32.mrb[0].mxu0
    %v635 = vadd.f32 0.0, %v634
    %636 = vmatprep.mubr.bf16.mxu0 %v437
    %637 = vmatmul.mubr.bf16.gmra.mrb[0].mxu0 %v436
    %v638 = vpop.f32.mrb[0].mxu0
    %v639 = vadd.f32 0.0, %v638
    %v640 = vpop.f32.mrb[0].mxu0
    %v641 = vadd.f32 0.0, %v640
    %v642 = vpop.f32.mrb[0].mxu0
    %v643 = vadd.f32 0.0, %v642
    %v644 = vpop.f32.mrb[0].mxu0
    %v645 = vadd.f32 0.0, %v644
    %646 = vmatprep.mubr.bf16.mxu0 %v440
    %647 = vmatmul.mubr.bf16.gmra.mrb[0].mxu0 %v439
    %v648 = vpop.f32.mrb[0].mxu0
    %v649 = vadd.f32 0.0, %v648
    %v650 = vpop.f32.mrb[0].mxu0
    %v651 = vadd.f32 0.0, %v650
    %v652 = vpop.f32.mrb[0].mxu0
    %v653 = vadd.f32 0.0, %v652
    %v654 = vpop.f32.mrb[0].mxu0
    %v655 = vadd.f32 0.0, %v654
    %656 = vmatprep.mubr.bf16.mxu0 %v443
    %657 = vmatmul.mubr.bf16.gmra.mrb[0].mxu0 %v442
    %v658 = vpop.f32.mrb[0].mxu0
    %v659 = vadd.f32 0.0, %v658
    %v660 = vpop.f32.mrb[0].mxu0
    %v661 = vadd.f32 0.0, %v660
    %v662 = vpop.f32.mrb[0].mxu0
    %v663 = vadd.f32 0.0, %v662
    %v664 = vpop.f32.mrb[0].mxu0
    %v665 = vadd.f32 0.0, %v664
    %666 = vmatprep.mubr.bf16.mxu0 %v446
    %667 = vmatmul.mubr.bf16.gmra.mrb[0].mxu0 %v445
    %v668 = vpop.f32.mrb[0].mxu0
    %v669 = vadd.f32 0.0, %v668
    %v670 = vpop.f32.mrb[0].mxu0
    %v671 = vadd.f32 0.0, %v670
    %v672 = vpop.f32.mrb[0].mxu0
    %v673 = vadd.f32 0.0, %v672
    %v674 = vpop.f32.mrb[0].mxu0
    %v675 = vadd.f32 0.0, %v674
    %676 = vmatprep.mubr.bf16.mxu0 %v449
    %677 = vmatmul.mubr.bf16.gmra.mrb[0].mxu0 %v448
    %v678 = vpop.f32.mrb[0].mxu0
    %v679 = vadd.f32 0.0, %v678
    %v680 = vpop.f32.mrb[0].mxu0
    %v681 = vadd.f32 0.0, %v680
    %v682 = vpop.f32.mrb[0].mxu0
    %v683 = vadd.f32 0.0, %v682
    %v684 = vpop.f32.mrb[0].mxu0
    %v685 = vadd.f32 0.0, %v684
    %686 = vmatprep.mubr.bf16.mxu0 %v452
    %687 = vmatmul.mubr.bf16.gmra.mrb[0].mxu0 %v451
    %v688 = vpop.f32.mrb[0].mxu0
    %v689 = vadd.f32 0.0, %v688
    %v690 = vpop.f32.mrb[0].mxu0
    %v691 = vadd.f32 0.0, %v690
    %v692 = vpop.f32.mrb[0].mxu0
    %v693 = vadd.f32 0.0, %v692
    %v694 = vpop.f32.mrb[0].mxu0
    %v695 = vadd.f32 0.0, %v694
    %696 = vmatprep.mubr.bf16.mxu0 %v455
    %697 = vmatmul.mubr.bf16.gmra.mrb[0].mxu0 %v454
    %v698 = vpop.f32.mrb[0].mxu0
    %v699 = vadd.f32 0.0, %v698
    %v700 = vpop.f32.mrb[0].mxu0
    %v701 = vadd.f32 0.0, %v700
    %v702 = vpop.f32.mrb[0].mxu0
    %v703 = vadd.f32 0.0, %v702
    %v704 = vpop.f32.mrb[0].mxu0
    %v705 = vadd.f32 0.0, %v704
    %706 = vmatprep.mubr.bf16.mxu0 %v458
    %707 = vmatmul.mubr.bf16.gmra.mrb[0].mxu0 %v457
    %v708 = vpop.f32.mrb[0].mxu0
    %v709 = vadd.f32 0.0, %v708
    %v710 = vpop.f32.mrb[0].mxu0
    %v711 = vadd.f32 0.0, %v710
    %v712 = vpop.f32.mrb[0].mxu0
    %v713 = vadd.f32 0.0, %v712
    %v714 = vpop.f32.mrb[0].mxu0
    %v715 = vadd.f32 0.0, %v714
    %716 = vmatprep.mubr.bf16.mxu0 %v461
    %717 = vmatmul.mubr.bf16.gmra.mrb[0].mxu0 %v460
    %v718 = vpop.f32.mrb[0].mxu0
    %v719 = vadd.f32 0.0, %v718
    %v720 = vpop.f32.mrb[0].mxu0
    %v721 = vadd.f32 0.0, %v720
    %v722 = vpop.f32.mrb[0].mxu0
    %v723 = vadd.f32 0.0, %v722
    %v724 = vpop.f32.mrb[0].mxu0
    %v725 = vadd.f32 0.0, %v724
    %726 = vmatprep.mubr.bf16.mxu0 %v464
    %727 = vmatmul.mubr.bf16.gmra.mrb[0].mxu0 %v463
    %v728 = vpop.f32.mrb[0].mxu0
    %v729 = vadd.f32 0.0, %v728
    %v730 = vpop.f32.mrb[0].mxu0
    %v731 = vadd.f32 0.0, %v730
    %v732 = vpop.f32.mrb[0].mxu0
    %v733 = vadd.f32 0.0, %v732
    %v734 = vpop.f32.mrb[0].mxu0
    %v735 = vadd.f32 0.0, %v734
    %736 = vmatprep.mubr.bf16.mxu0 %v467
    %737 = vmatmul.mubr.bf16.gmra.mrb[0].mxu0 %v466
    %v738 = vpop.f32.mrb[0].mxu0
    %v739 = vadd.f32 0.0, %v738
    %v740 = vpop.f32.mrb[0].mxu0
    %v741 = vadd.f32 0.0, %v740
    %v742 = vpop.f32.mrb[0].mxu0
    %v743 = vadd.f32 0.0, %v742
    %v744 = vpop.f32.mrb[0].mxu0
    %v745 = vadd.f32 0.0, %v744
    %746 = vmatprep.mubr.bf16.mxu0 %v470
    %747 = vmatmul.mubr.bf16.gmra.mrb[0].mxu0 %v469
    %v748 = vpop.f32.mrb[0].mxu0
    %v749 = vadd.f32 0.0, %v748
    %v750 = vpop.f32.mrb[0].mxu0
    %v751 = vadd.f32 0.0, %v750
    %v752 = vpop.f32.mrb[0].mxu0
    %v753 = vadd.f32 0.0, %v752
    %v754 = vpop.f32.mrb[0].mxu0
    %v755 = vadd.f32 0.0, %v754
    %756 = vmatprep.mubr.bf16.mxu0 %v473
    %757 = vmatmul.mubr.bf16.gmra.mrb[0].mxu0 %v472
    %v758 = vpop.f32.mrb[0].mxu0
    %v759 = vadd.f32 0.0, %v758
    %v760 = vpop.f32.mrb[0].mxu0
    %v761 = vadd.f32 0.0, %v760
    %v762 = vpop.f32.mrb[0].mxu0
    %v763 = vadd.f32 0.0, %v762
    %v764 = vpop.f32.mrb[0].mxu0
    %v765 = vadd.f32 0.0, %v764
    %766 = vmatprep.mubr.bf16.mxu0 %v476
    %767 = vmatmul.mubr.bf16.gmra.mrb[0].mxu0 %v475
    %v768 = vpop.f32.mrb[0].mxu0
    %v769 = vadd.f32 0.0, %v768
    %v770 = vpop.f32.mrb[0].mxu0
    %v771 = vadd.f32 0.0, %v770
    %v772 = vpop.f32.mrb[0].mxu0
    %v773 = vadd.f32 0.0, %v772
    %v774 = vpop.f32.mrb[0].mxu0
    %v775 = vadd.f32 0.0, %v774
    %776 = vmatprep.mubr.bf16.mxu0 %v479
    %777 = vmatmul.mubr.bf16.gmra.mrb[0].mxu0 %v478
    %v778 = vpop.f32.mrb[0].mxu0
    %v779 = vadd.f32 0.0, %v778
    %v780 = vpop.f32.mrb[0].mxu0
    %v781 = vadd.f32 0.0, %v780
    %v782 = vpop.f32.mrb[0].mxu0
    %v783 = vadd.f32 0.0, %v782
    %v784 = vpop.f32.mrb[0].mxu0
    %v785 = vadd.f32 0.0, %v784
    %786 = vmatprep.mubr.bf16.mxu0 %v482
    %787 = vmatmul.mubr.bf16.gmra.mrb[0].mxu0 %v481
    %v788 = vpop.f32.mrb[0].mxu0
    %v789 = vadd.f32 0.0, %v788
    %v790 = vpop.f32.mrb[0].mxu0
    %v791 = vadd.f32 0.0, %v790
    %v792 = vpop.f32.mrb[0].mxu0
    %v793 = vadd.f32 0.0, %v792
    %v794 = vpop.f32.mrb[0].mxu0
    %v795 = vadd.f32 0.0, %v794
    %796 = vmatprep.mubr.bf16.mxu0 %v485
    %797 = vmatmul.mubr.bf16.gmra.mrb[0].mxu0 %v484
    %v798 = vpop.f32.mrb[0].mxu0
    %v799 = vadd.f32 0.0, %v798
    %v800 = vpop.f32.mrb[0].mxu0
    %v801 = vadd.f32 0.0, %v800
    %v802 = vpop.f32.mrb[0].mxu0
    %v803 = vadd.f32 0.0, %v802
    %v804 = vpop.f32.mrb[0].mxu0
    %v805 = vadd.f32 0.0, %v804
    %806 = vmatprep.mubr.bf16.mxu0 %v488
    %807 = vmatmul.mubr.bf16.gmra.mrb[0].mxu0 %v487
    %v808 = vpop.f32.mrb[0].mxu0
    %v809 = vadd.f32 0.0, %v808
    %v810 = vpop.f32.mrb[0].mxu0
    %v811 = vadd.f32 0.0, %v810
    %v812 = vpop.f32.mrb[0].mxu0
    %v813 = vadd.f32 0.0, %v812
    %v814 = vpop.f32.mrb[0].mxu0
    %v815 = vadd.f32 0.0, %v814
    %816 = vmatprep.mubr.bf16.mxu0 %v491
    %817 = vmatmul.mubr.bf16.gmra.mrb[0].mxu0 %v490
    %v818 = vpop.f32.mrb[0].mxu0
    %v819 = vadd.f32 0.0, %v818
    %v820 = vpop.f32.mrb[0].mxu0
    %v821 = vadd.f32 0.0, %v820
    %v822 = vpop.f32.mrb[0].mxu0
    %v823 = vadd.f32 0.0, %v822
    %v824 = vpop.f32.mrb[0].mxu0
    %v825 = vadd.f32 0.0, %v824
    %826 = vdwg.mxu0
    %827 = vmatprep.subr.bf16.mxu0 %v226
    %828 = vmatpush1.bf16.msra.mxu0 %v225
    %829 = vmatprep.subr.bf16.mxu0 %v228
    %830 = vmatpush1.bf16.msra.mxu0 %v227
    %831 = vmatprep.subr.bf16.mxu0 %v230
    %832 = vmatpush1.bf16.msra.mxu0 %v229
    %833 = vmatprep.subr.bf16.mxu0 %v232
    %834 = vmatpush1.bf16.msra.mxu0 %v231
    %835 = vmatprep.subr.bf16.mxu0 0
    %836 = vmatpush1.bf16.msra.mxu0 0
    %837 = vmatprep.subr.bf16.mxu0 0
    %838 = vmatpush1.bf16.msra.mxu0 0
    %839 = vmatprep.subr.bf16.mxu0 0
    %840 = vmatpush1.bf16.msra.mxu0 0
    %841 = vmatprep.subr.bf16.mxu0 0
    %842 = vmatpush1.bf16.msra.mxu0 0
    %843 = vmatprep.subr.bf16.mxu0 0
    %844 = vmatpush1.bf16.msra.mxu0 0
    %845 = vmatprep.subr.bf16.mxu0 0
    %846 = vmatpush1.bf16.msra.mxu0 0
    %847 = vmatprep.subr.bf16.mxu0 0
    %848 = vmatpush1.bf16.msra.mxu0 0
    %849 = vmatprep.subr.bf16.mxu0 0
    %850 = vmatpush1.bf16.msra.mxu0 0
    %851 = vmatprep.subr.bf16.mxu0 0
    %852 = vmatpush1.bf16.msra.mxu0 0
    %853 = vmatprep.subr.bf16.mxu0 0
    %854 = vmatpush1.bf16.msra.mxu0 0
    %855 = vmatprep.subr.bf16.mxu0 0
    %856 = vmatpush1.bf16.msra.mxu0 0
    %857 = vmatprep.subr.bf16.mxu0 0
    %858 = vmatpush1.bf16.msra.mxu0 0
    %859 = vmatprep.mubr.bf16.mxu0 0
    %860 = vmatmul.mubr.bf16.gmra.mrb[0].mxu0 %v535
    %v861 = vpop.f32.mrb[0].mxu0
    %v862 = vadd.f32 %v629, %v861
    %v863 = vpop.f32.mrb[0].mxu0
    %v864 = vadd.f32 %v631, %v863
    %v865 = vpop.f32.mrb[0].mxu0
    %v866 = vadd.f32 %v633, %v865
    %v867 = vpop.f32.mrb[0].mxu0
    %v868 = vadd.f32 %v635, %v867
    %869 = vmatprep.mubr.bf16.mxu0 0
    %870 = vmatmul.mubr.bf16.gmra.mrb[0].mxu0 %v538
    %v871 = vpop.f32.mrb[0].mxu0
    %v872 = vadd.f32 %v639, %v871
    %v873 = vpop.f32.mrb[0].mxu0
    %v874 = vadd.f32 %v641, %v873
    %v875 = vpop.f32.mrb[0].mxu0
    %v876 = vadd.f32 %v643, %v875
    %v877 = vpop.f32.mrb[0].mxu0
    %v878 = vadd.f32 %v645, %v877
    %879 = vmatprep.mubr.bf16.mxu0 0
    %880 = vmatmul.mubr.bf16.gmra.mrb[0].mxu0 %v541
    %v881 = vpop.f32.mrb[0].mxu0
    %v882 = vadd.f32 %v649, %v881
    %v883 = vpop.f32.mrb[0].mxu0
    %v884 = vadd.f32 %v651, %v883
    %v885 = vpop.f32.mrb[0].mxu0
    %v886 = vadd.f32 %v653, %v885
    %v887 = vpop.f32.mrb[0].mxu0
    %v888 = vadd.f32 %v655, %v887
    %889 = vmatprep.mubr.bf16.mxu0 0
    %890 = vmatmul.mubr.bf16.gmra.mrb[0].mxu0 %v544
    %v891 = vpop.f32.mrb[0].mxu0
    %v892 = vadd.f32 %v659, %v891
    %v893 = vpop.f32.mrb[0].mxu0
    %v894 = vadd.f32 %v661, %v893
    %v895 = vpop.f32.mrb[0].mxu0
    %v896 = vadd.f32 %v663, %v895
    %v897 = vpop.f32.mrb[0].mxu0
    %v898 = vadd.f32 %v665, %v897
    %899 = vmatprep.mubr.bf16.mxu0 0
    %900 = vmatmul.mubr.bf16.gmra.mrb[0].mxu0 %v547
    %v901 = vpop.f32.mrb[0].mxu0
    %v902 = vadd.f32 %v669, %v901
    %v903 = vpop.f32.mrb[0].mxu0
    %v904 = vadd.f32 %v671, %v903
    %v905 = vpop.f32.mrb[0].mxu0
    %v906 = vadd.f32 %v673, %v905
    %v907 = vpop.f32.mrb[0].mxu0
    %v908 = vadd.f32 %v675, %v907
    %909 = vmatprep.mubr.bf16.mxu0 0
    %910 = vmatmul.mubr.bf16.gmra.mrb[0].mxu0 %v550
    %v911 = vpop.f32.mrb[0].mxu0
    %v912 = vadd.f32 %v679, %v911
    %v913 = vpop.f32.mrb[0].mxu0
    %v914 = vadd.f32 %v681, %v913
    %v915 = vpop.f32.mrb[0].mxu0
    %v916 = vadd.f32 %v683, %v915
    %v917 = vpop.f32.mrb[0].mxu0
    %v918 = vadd.f32 %v685, %v917
    %919 = vmatprep.mubr.bf16.mxu0 0
    %920 = vmatmul.mubr.bf16.gmra.mrb[0].mxu0 %v553
    %v921 = vpop.f32.mrb[0].mxu0
    %v922 = vadd.f32 %v689, %v921
    %v923 = vpop.f32.mrb[0].mxu0
    %v924 = vadd.f32 %v691, %v923
    %v925 = vpop.f32.mrb[0].mxu0
    %v926 = vadd.f32 %v693, %v925
    %v927 = vpop.f32.mrb[0].mxu0
    %v928 = vadd.f32 %v695, %v927
    %929 = vmatprep.mubr.bf16.mxu0 0
    %930 = vmatmul.mubr.bf16.gmra.mrb[0].mxu0 %v556
    %v931 = vpop.f32.mrb[0].mxu0
    %v932 = vadd.f32 %v699, %v931
    %v933 = vpop.f32.mrb[0].mxu0
    %v934 = vadd.f32 %v701, %v933
    %v935 = vpop.f32.mrb[0].mxu0
    %v936 = vadd.f32 %v703, %v935
    %v937 = vpop.f32.mrb[0].mxu0
    %v938 = vadd.f32 %v705, %v937
    %939 = vmatprep.mubr.bf16.mxu0 0
    %940 = vmatmul.mubr.bf16.gmra.mrb[0].mxu0 %v559
    %v941 = vpop.f32.mrb[0].mxu0
    %v942 = vadd.f32 %v709, %v941
    %v943 = vpop.f32.mrb[0].mxu0
    %v944 = vadd.f32 %v711, %v943
    %v945 = vpop.f32.mrb[0].mxu0
    %v946 = vadd.f32 %v713, %v945
    %v947 = vpop.f32.mrb[0].mxu0
    %v948 = vadd.f32 %v715, %v947
    %949 = vmatprep.mubr.bf16.mxu0 0
    %950 = vmatmul.mubr.bf16.gmra.mrb[0].mxu0 %v562
    %v951 = vpop.f32.mrb[0].mxu0
    %v952 = vadd.f32 %v719, %v951
    %v953 = vpop.f32.mrb[0].mxu0
    %v954 = vadd.f32 %v721, %v953
    %v955 = vpop.f32.mrb[0].mxu0
    %v956 = vadd.f32 %v723, %v955
    %v957 = vpop.f32.mrb[0].mxu0
    %v958 = vadd.f32 %v725, %v957
    %959 = vmatprep.mubr.bf16.mxu0 0
    %960 = vmatmul.mubr.bf16.gmra.mrb[0].mxu0 %v565
    %v961 = vpop.f32.mrb[0].mxu0
    %v962 = vadd.f32 %v729, %v961
    %v963 = vpop.f32.mrb[0].mxu0
    %v964 = vadd.f32 %v731, %v963
    %v965 = vpop.f32.mrb[0].mxu0
    %v966 = vadd.f32 %v733, %v965
    %v967 = vpop.f32.mrb[0].mxu0
    %v968 = vadd.f32 %v735, %v967
    %969 = vmatprep.mubr.bf16.mxu0 0
    %970 = vmatmul.mubr.bf16.gmra.mrb[0].mxu0 %v568
    %v971 = vpop.f32.mrb[0].mxu0
    %v972 = vadd.f32 %v739, %v971
    %v973 = vpop.f32.mrb[0].mxu0
    %v974 = vadd.f32 %v741, %v973
    %v975 = vpop.f32.mrb[0].mxu0
    %v976 = vadd.f32 %v743, %v975
    %v977 = vpop.f32.mrb[0].mxu0
    %v978 = vadd.f32 %v745, %v977
    %979 = vmatprep.mubr.bf16.mxu0 0
    %980 = vmatmul.mubr.bf16.gmra.mrb[0].mxu0 %v571
    %v981 = vpop.f32.mrb[0].mxu0
    %v982 = vadd.f32 %v749, %v981
    %v983 = vpop.f32.mrb[0].mxu0
    %v984 = vadd.f32 %v751, %v983
    %v985 = vpop.f32.mrb[0].mxu0
    %v986 = vadd.f32 %v753, %v985
    %v987 = vpop.f32.mrb[0].mxu0
    %v988 = vadd.f32 %v755, %v987
    %989 = vmatprep.mubr.bf16.mxu0 0
    %990 = vmatmul.mubr.bf16.gmra.mrb[0].mxu0 %v574
    %v991 = vpop.f32.mrb[0].mxu0
    %v992 = vadd.f32 %v759, %v991
    %v993 = vpop.f32.mrb[0].mxu0
    %v994 = vadd.f32 %v761, %v993
    %v995 = vpop.f32.mrb[0].mxu0
    %v996 = vadd.f32 %v763, %v995
    %v997 = vpop.f32.mrb[0].mxu0
    %v998 = vadd.f32 %v765, %v997
    %999 = vmatprep.mubr.bf16.mxu0 0
    %1000 = vmatmul.mubr.bf16.gmra.mrb[0].mxu0 %v577
    %v1001 = vpop.f32.mrb[0].mxu0
    %v1002 = vadd.f32 %v769, %v1001
    %v1003 = vpop.f32.mrb[0].mxu0
    %v1004 = vadd.f32 %v771, %v1003
    %v1005 = vpop.f32.mrb[0].mxu0
    %v1006 = vadd.f32 %v773, %v1005
    %v1007 = vpop.f32.mrb[0].mxu0
    %v1008 = vadd.f32 %v775, %v1007
    %1009 = vmatprep.mubr.bf16.mxu0 0
    %1010 = vmatmul.mubr.bf16.gmra.mrb[0].mxu0 %v580
    %v1011 = vpop.f32.mrb[0].mxu0
    %v1012 = vadd.f32 %v779, %v1011
    %v1013 = vpop.f32.mrb[0].mxu0
    %v1014 = vadd.f32 %v781, %v1013
    %v1015 = vpop.f32.mrb[0].mxu0
    %v1016 = vadd.f32 %v783, %v1015
    %v1017 = vpop.f32.mrb[0].mxu0
    %v1018 = vadd.f32 %v785, %v1017
    %1019 = vmatprep.mubr.bf16.mxu0 0
    %1020 = vmatmul.mubr.bf16.gmra.mrb[0].mxu0 %v583
    %v1021 = vpop.f32.mrb[0].mxu0
    %v1022 = vadd.f32 %v789, %v1021
    %v1023 = vpop.f32.mrb[0].mxu0
    %v1024 = vadd.f32 %v791, %v1023
    %v1025 = vpop.f32.mrb[0].mxu0
    %v1026 = vadd.f32 %v793, %v1025
    %v1027 = vpop.f32.mrb[0].mxu0
    %v1028 = vadd.f32 %v795, %v1027
    %1029 = vmatprep.mubr.bf16.mxu0 0
    %1030 = vmatmul.mubr.bf16.gmra.mrb[0].mxu0 %v586
    %v1031 = vpop.f32.mrb[0].mxu0
    %v1032 = vadd.f32 %v799, %v1031
    %v1033 = vpop.f32.mrb[0].mxu0
    %v1034 = vadd.f32 %v801, %v1033
    %v1035 = vpop.f32.mrb[0].mxu0
    %v1036 = vadd.f32 %v803, %v1035
    %v1037 = vpop.f32.mrb[0].mxu0
    %v1038 = vadd.f32 %v805, %v1037
    %1039 = vmatprep.mubr.bf16.mxu0 0
    %1040 = vmatmul.mubr.bf16.gmra.mrb[0].mxu0 %v589
    %v1041 = vpop.f32.mrb[0].mxu0
    %v1042 = vadd.f32 %v809, %v1041
    %v1043 = vpop.f32.mrb[0].mxu0
    %v1044 = vadd.f32 %v811, %v1043
    %v1045 = vpop.f32.mrb[0].mxu0
    %v1046 = vadd.f32 %v813, %v1045
    %v1047 = vpop.f32.mrb[0].mxu0
    %v1048 = vadd.f32 %v815, %v1047
    %1049 = vmatprep.mubr.bf16.mxu0 0
    %1050 = vmatmul.mubr.bf16.gmra.mrb[0].mxu0 %v592
    %v1051 = vpop.f32.mrb[0].mxu0
    %v1052 = vadd.f32 %v819, %v1051
    %v1053 = vpop.f32.mrb[0].mxu0
    %v1054 = vadd.f32 %v821, %v1053
    %v1055 = vpop.f32.mrb[0].mxu0
    %v1056 = vadd.f32 %v823, %v1055
    %v1057 = vpop.f32.mrb[0].mxu0
    %v1058 = vadd.f32 %v825, %v1057
    %1059 = vdwg.mxu0
    %v1060 = vadd.f32 %v862, %v864
    %1061 = vadd.xlane.f32.xlu0 %v1060
    %v1062 = vpop.xlane.xlu0 %1061
    %v1063 = vadd.f32 %v866, %v868
    %1064 = vadd.xlane.f32.xlu0 %v1063
    %v1065 = vpop.xlane.xlu0 %1064
    %v1066 = vadd.f32 %v872, %v874
    %1067 = vadd.xlane.f32.xlu0 %v1066
    %v1068 = vpop.xlane.xlu0 %1067
    %v1069 = vadd.f32 %v876, %v878
    %1070 = vadd.xlane.f32.xlu0 %v1069
    %v1071 = vpop.xlane.xlu0 %1070
    %v1072 = vadd.f32 %v882, %v884
    %1073 = vadd.xlane.f32.xlu0 %v1072
    %v1074 = vpop.xlane.xlu0 %1073
    %v1075 = vadd.f32 %v886, %v888
    %1076 = vadd.xlane.f32.xlu0 %v1075
    %v1077 = vpop.xlane.xlu0 %1076
    %v1078 = vadd.f32 %v892, %v894
    %1079 = vadd.xlane.f32.xlu0 %v1078
    %v1080 = vpop.xlane.xlu0 %1079
    %v1081 = vadd.f32 %v896, %v898
    %1082 = vadd.xlane.f32.xlu0 %v1081
    %v1083 = vpop.xlane.xlu0 %1082
    %v1084 = vadd.f32 %v902, %v904
    %1085 = vadd.xlane.f32.xlu0 %v1084
    %v1086 = vpop.xlane.xlu0 %1085
    %v1087 = vadd.f32 %v906, %v908
    %1088 = vadd.xlane.f32.xlu0 %v1087
    %v1089 = vpop.xlane.xlu0 %1088
    %v1090 = vadd.f32 %v912, %v914
    %1091 = vadd.xlane.f32.xlu0 %v1090
    %v1092 = vpop.xlane.xlu0 %1091
    %v1093 = vadd.f32 %v916, %v918
    %1094 = vadd.xlane.f32.xlu0 %v1093
    %v1095 = vpop.xlane.xlu0 %1094
    %v1096 = vadd.f32 %v922, %v924
    %1097 = vadd.xlane.f32.xlu0 %v1096
    %v1098 = vpop.xlane.xlu0 %1097
    %v1099 = vadd.f32 %v926, %v928
    %1100 = vadd.xlane.f32.xlu0 %v1099
    %v1101 = vpop.xlane.xlu0 %1100
    %v1102 = vadd.f32 %v932, %v934
    %1103 = vadd.xlane.f32.xlu0 %v1102
    %v1104 = vpop.xlane.xlu0 %1103
    %v1105 = vadd.f32 %v936, %v938
    %1106 = vadd.xlane.f32.xlu0 %v1105
    %v1107 = vpop.xlane.xlu0 %1106
    %v1108 = vadd.f32 %v942, %v944
    %1109 = vadd.xlane.f32.xlu0 %v1108
    %v1110 = vpop.xlane.xlu0 %1109
    %v1111 = vadd.f32 %v946, %v948
    %1112 = vadd.xlane.f32.xlu0 %v1111
    %v1113 = vpop.xlane.xlu0 %1112
    %v1114 = vadd.f32 %v952, %v954
    %1115 = vadd.xlane.f32.xlu0 %v1114
    %v1116 = vpop.xlane.xlu0 %1115
    %v1117 = vadd.f32 %v956, %v958
    %1118 = vadd.xlane.f32.xlu0 %v1117
    %v1119 = vpop.xlane.xlu0 %1118
    %v1120 = vadd.f32 %v962, %v964
    %1121 = vadd.xlane.f32.xlu0 %v1120
    %v1122 = vpop.xlane.xlu0 %1121
    %v1123 = vadd.f32 %v966, %v968
    %1124 = vadd.xlane.f32.xlu0 %v1123
    %v1125 = vpop.xlane.xlu0 %1124
    %v1126 = vadd.f32 %v972, %v974
    %1127 = vadd.xlane.f32.xlu0 %v1126
    %v1128 = vpop.xlane.xlu0 %1127
    %v1129 = vadd.f32 %v976, %v978
    %1130 = vadd.xlane.f32.xlu0 %v1129
    %v1131 = vpop.xlane.xlu0 %1130
    %v1132 = vadd.f32 %v982, %v984
    %1133 = vadd.xlane.f32.xlu0 %v1132
    %v1134 = vpop.xlane.xlu0 %1133
    %v1135 = vadd.f32 %v986, %v988
    %1136 = vadd.xlane.f32.xlu0 %v1135
    %v1137 = vpop.xlane.xlu0 %1136
    %v1138 = vadd.f32 %v992, %v994
    %1139 = vadd.xlane.f32.xlu0 %v1138
    %v1140 = vpop.xlane.xlu0 %1139
    %v1141 = vadd.f32 %v996, %v998
    %1142 = vadd.xlane.f32.xlu0 %v1141
    %v1143 = vpop.xlane.xlu0 %1142
    %v1144 = vadd.f32 %v1002, %v1004
    %1145 = vadd.xlane.f32.xlu0 %v1144
    %v1146 = vpop.xlane.xlu0 %1145
    %v1147 = vadd.f32 %v1006, %v1008
    %1148 = vadd.xlane.f32.xlu0 %v1147
    %v1149 = vpop.xlane.xlu0 %1148
    %v1150 = vadd.f32 %v1012, %v1014
    %1151 = vadd.xlane.f32.xlu0 %v1150
    %v1152 = vpop.xlane.xlu0 %1151
    %v1153 = vadd.f32 %v1016, %v1018
    %1154 = vadd.xlane.f32.xlu0 %v1153
    %v1155 = vpop.xlane.xlu0 %1154
    %v1156 = vadd.f32 %v1022, %v1024
    %1157 = vadd.xlane.f32.xlu0 %v1156
    %v1158 = vpop.xlane.xlu0 %1157
    %v1159 = vadd.f32 %v1026, %v1028
    %1160 = vadd.xlane.f32.xlu0 %v1159
    %v1161 = vpop.xlane.xlu0 %1160
    %v1162 = vadd.f32 %v1032, %v1034
    %1163 = vadd.xlane.f32.xlu0 %v1162
    %v1164 = vpop.xlane.xlu0 %1163
    %v1165 = vadd.f32 %v1036, %v1038
    %1166 = vadd.xlane.f32.xlu0 %v1165
    %v1167 = vpop.xlane.xlu0 %1166
    %v1168 = vadd.f32 %v1042, %v1044
    %1169 = vadd.xlane.f32.xlu0 %v1168
    %v1170 = vpop.xlane.xlu0 %1169
    %v1171 = vadd.f32 %v1046, %v1048
    %1172 = vadd.xlane.f32.xlu0 %v1171
    %v1173 = vpop.xlane.xlu0 %1172
    %v1174 = vadd.f32 %v1052, %v1054
    %1175 = vadd.xlane.f32.xlu0 %v1174
    %v1176 = vpop.xlane.xlu0 %1175
    %v1177 = vadd.f32 %v1056, %v1058
    %1178 = vadd.xlane.f32.xlu0 %v1177
    %v1179 = vpop.xlane.xlu0 %1178
    %v1180 = vmul.f32 %v1062, 0.0051020407
    %v1181 = vmul.f32 %v1065, 0.0051020407
    %v1182 = vmul.f32 %v1068, 0.0051020407
    %v1183 = vmul.f32 %v1071, 0.0051020407
    %v1184 = vmul.f32 %v1074, 0.0051020407
    %v1185 = vmul.f32 %v1077, 0.0051020407
    %v1186 = vmul.f32 %v1080, 0.0051020407
    %v1187 = vmul.f32 %v1083, 0.0051020407
    %v1188 = vmul.f32 %v1086, 0.0051020407
    %v1189 = vmul.f32 %v1089, 0.0051020407
    %v1190 = vmul.f32 %v1092, 0.0051020407
    %v1191 = vmul.f32 %v1095, 0.0051020407
    %v1192 = vmul.f32 %v1098, 0.0051020407
    %v1193 = vmul.f32 %v1101, 0.0051020407
    %v1194 = vmul.f32 %v1104, 0.0051020407
    %v1195 = vmul.f32 %v1107, 0.0051020407
    %v1196 = vmul.f32 %v1110, 0.0051020407
    %v1197 = vmul.f32 %v1113, 0.0051020407
    %v1198 = vmul.f32 %v1116, 0.0051020407
    %v1199 = vmul.f32 %v1119, 0.0051020407
    %v1200 = vmul.f32 %v1122, 0.0051020407
    %v1201 = vmul.f32 %v1125, 0.0051020407
    %v1202 = vmul.f32 %v1128, 0.0051020407
    %v1203 = vmul.f32 %v1131, 0.0051020407
    %v1204 = vmul.f32 %v1134, 0.0051020407
    %v1205 = vmul.f32 %v1137, 0.0051020407
    %v1206 = vmul.f32 %v1140, 0.0051020407
    %v1207 = vmul.f32 %v1143, 0.0051020407
    %v1208 = vmul.f32 %v1146, 0.0051020407
    %v1209 = vmul.f32 %v1149, 0.0051020407
    %v1210 = vmul.f32 %v1152, 0.0051020407
    %v1211 = vmul.f32 %v1155, 0.0051020407
    %v1212 = vmul.f32 %v1158, 0.0051020407
    %v1213 = vmul.f32 %v1161, 0.0051020407
    %v1214 = vmul.f32 %v1164, 0.0051020407
    %v1215 = vmul.f32 %v1167, 0.0051020407
    %v1216 = vmul.f32 %v1170, 0.0051020407
    %v1217 = vmul.f32 %v1173, 0.0051020407
    %v1218 = vmul.f32 %v1176, 0.0051020407
    %v1219 = vmul.f32 %v1179, 0.0051020407
    %v1220 = vlaneseq
    %v1221 = vand.u32 %v1220, 127
    %v1222 = vadd.s32 %v1221, 128
    %vm1223 = vcmp.lt.s32.totalorder %v1221, 196
    %vm1224 = vcmp.lt.s32.totalorder %v1222, 196
    %v1225 = vsub.f32 %v862, %v1180
    %v1226 = vsub.f32 %v864, %v1180
    %v1227 = vsub.f32 %v866, %v1181
    %v1228 = vsub.f32 %v868, %v1181
    %v1229 = vsub.f32 %v872, %v1182
    %v1230 = vsub.f32 %v874, %v1182
    %v1231 = vsub.f32 %v876, %v1183
    %v1232 = vsub.f32 %v878, %v1183
    %v1233 = vsub.f32 %v882, %v1184
    %v1234 = vsub.f32 %v884, %v1184
    %v1235 = vsub.f32 %v886, %v1185
    %v1236 = vsub.f32 %v888, %v1185
    %v1237 = vsub.f32 %v892, %v1186
    %v1238 = vsub.f32 %v894, %v1186
    %v1239 = vsub.f32 %v896, %v1187
    %v1240 = vsub.f32 %v898, %v1187
    %v1241 = vsub.f32 %v902, %v1188
    %v1242 = vsub.f32 %v904, %v1188
    %v1243 = vsub.f32 %v906, %v1189
    %v1244 = vsub.f32 %v908, %v1189
    %v1245 = vsub.f32 %v912, %v1190
    %v1246 = vsub.f32 %v914, %v1190
    %v1247 = vsub.f32 %v916, %v1191
    %v1248 = vsub.f32 %v918, %v1191
    %v1249 = vsub.f32 %v922, %v1192
    %v1250 = vsub.f32 %v924, %v1192
    %v1251 = vsub.f32 %v926, %v1193
    %v1252 = vsub.f32 %v928, %v1193
    %v1253 = vsub.f32 %v932, %v1194
    %v1254 = vsub.f32 %v934, %v1194
    %v1255 = vsub.f32 %v936, %v1195
    %v1256 = vsub.f32 %v938, %v1195
    %v1257 = vsub.f32 %v942, %v1196
    %v1258 = vsub.f32 %v944, %v1196
    %v1259 = vsub.f32 %v946, %v1197
    %v1260 = vsub.f32 %v948, %v1197
    %v1261 = vsub.f32 %v952, %v1198
    %v1262 = vsub.f32 %v954, %v1198
    %v1263 = vsub.f32 %v956, %v1199
    %v1264 = vsub.f32 %v958, %v1199
    %v1265 = vsub.f32 %v962, %v1200
    %v1266 = vsub.f32 %v964, %v1200
    %v1267 = vsub.f32 %v966, %v1201
    %v1268 = vsub.f32 %v968, %v1201
    %v1269 = vsub.f32 %v972, %v1202
    %v1270 = vsub.f32 %v974, %v1202
    %v1271 = vsub.f32 %v976, %v1203
    %v1272 = vsub.f32 %v978, %v1203
    %v1273 = vsub.f32 %v982, %v1204
    %v1274 = vsub.f32 %v984, %v1204
    %v1275 = vsub.f32 %v986, %v1205
    %v1276 = vsub.f32 %v988, %v1205
    %v1277 = vsub.f32 %v992, %v1206
    %v1278 = vsub.f32 %v994, %v1206
    %v1279 = vsub.f32 %v996, %v1207
    %v1280 = vsub.f32 %v998, %v1207
    %v1281 = vsub.f32 %v1002, %v1208
    %v1282 = vsub.f32 %v1004, %v1208
    %v1283 = vsub.f32 %v1006, %v1209
    %v1284 = vsub.f32 %v1008, %v1209
    %v1285 = vsub.f32 %v1012, %v1210
    %v1286 = vsub.f32 %v1014, %v1210
    %v1287 = vsub.f32 %v1016, %v1211
    %v1288 = vsub.f32 %v1018, %v1211
    %v1289 = vsub.f32 %v1022, %v1212
    %v1290 = vsub.f32 %v1024, %v1212
    %v1291 = vsub.f32 %v1026, %v1213
    %v1292 = vsub.f32 %v1028, %v1213
    %v1293 = vsub.f32 %v1032, %v1214
    %v1294 = vsub.f32 %v1034, %v1214
    %v1295 = vsub.f32 %v1036, %v1215
    %v1296 = vsub.f32 %v1038, %v1215
    %v1297 = vsub.f32 %v1042, %v1216
    %v1298 = vsub.f32 %v1044, %v1216
    %v1299 = vsub.f32 %v1046, %v1217
    %v1300 = vsub.f32 %v1048, %v1217
    %v1301 = vsub.f32 %v1052, %v1218
    %v1302 = vsub.f32 %v1054, %v1218
    %v1303 = vsub.f32 %v1056, %v1219
    %v1304 = vsub.f32 %v1058, %v1219
    %v1305 = vsel %vm1223, 1, 0
    %v1306 = vsel %vm1224, 1, 0
    %vm1307 = vcmp.eq.s32.totalorder %v1305, 1
    %vm1308 = vcmp.eq.s32.totalorder %v1306, 1
    %v1309 = vsel %vm1307, %v1225, 0.0
    %v1310 = vsel %vm1308, %v1226, 0.0
    %v1311 = vsel %vm1307, %v1227, 0.0
    %v1312 = vsel %vm1308, %v1228, 0.0
    %v1313 = vsel %vm1307, %v1229, 0.0
    %v1314 = vsel %vm1308, %v1230, 0.0
    %v1315 = vsel %vm1307, %v1231, 0.0
    %v1316 = vsel %vm1308, %v1232, 0.0
    %v1317 = vsel %vm1307, %v1233, 0.0
    %v1318 = vsel %vm1308, %v1234, 0.0
    %v1319 = vsel %vm1307, %v1235, 0.0
    %v1320 = vsel %vm1308, %v1236, 0.0
    %v1321 = vsel %vm1307, %v1237, 0.0
    %v1322 = vsel %vm1308, %v1238, 0.0
    %v1323 = vsel %vm1307, %v1239, 0.0
    %v1324 = vsel %vm1308, %v1240, 0.0
    %v1325 = vsel %vm1307, %v1241, 0.0
    %v1326 = vsel %vm1308, %v1242, 0.0
    %v1327 = vsel %vm1307, %v1243, 0.0
    %v1328 = vsel %vm1308, %v1244, 0.0
    %v1329 = vsel %vm1307, %v1245, 0.0
    %v1330 = vsel %vm1308, %v1246, 0.0
    %v1331 = vsel %vm1307, %v1247, 0.0
    %v1332 = vsel %vm1308, %v1248, 0.0
    %v1333 = vsel %vm1307, %v1249, 0.0
    %v1334 = vsel %vm1308, %v1250, 0.0
    %v1335 = vsel %vm1307, %v1251, 0.0
    %v1336 = vsel %vm1308, %v1252, 0.0
    %v1337 = vsel %vm1307, %v1253, 0.0
    %v1338 = vsel %vm1308, %v1254, 0.0
    %v1339 = vsel %vm1307, %v1255, 0.0
    %v1340 = vsel %vm1308, %v1256, 0.0
    %v1341 = vsel %vm1307, %v1257, 0.0
    %v1342 = vsel %vm1308, %v1258, 0.0
    %v1343 = vsel %vm1307, %v1259, 0.0
    %v1344 = vsel %vm1308, %v1260, 0.0
    %v1345 = vsel %vm1307, %v1261, 0.0
    %v1346 = vsel %vm1308, %v1262, 0.0
    %v1347 = vsel %vm1307, %v1263, 0.0
    %v1348 = vsel %vm1308, %v1264, 0.0
    %v1349 = vsel %vm1307, %v1265, 0.0
    %v1350 = vsel %vm1308, %v1266, 0.0
    %v1351 = vsel %vm1307, %v1267, 0.0
    %v1352 = vsel %vm1308, %v1268, 0.0
    %v1353 = vsel %vm1307, %v1269, 0.0
    %v1354 = vsel %vm1308, %v1270, 0.0
    %v1355 = vsel %vm1307, %v1271, 0.0
    %v1356 = vsel %vm1308, %v1272, 0.0
    %v1357 = vsel %vm1307, %v1273, 0.0
    %v1358 = vsel %vm1308, %v1274, 0.0
    %v1359 = vsel %vm1307, %v1275, 0.0
    %v1360 = vsel %vm1308, %v1276, 0.0
    %v1361 = vsel %vm1307, %v1277, 0.0
    %v1362 = vsel %vm1308, %v1278, 0.0
    %v1363 = vsel %vm1307, %v1279, 0.0
    %v1364 = vsel %vm1308, %v1280, 0.0
    %v1365 = vsel %vm1307, %v1281, 0.0
    %v1366 = vsel %vm1308, %v1282, 0.0
    %v1367 = vsel %vm1307, %v1283, 0.0
    %v1368 = vsel %vm1308, %v1284, 0.0
    %v1369 = vsel %vm1307, %v1285, 0.0
    %v1370 = vsel %vm1308, %v1286, 0.0
    %v1371 = vsel %vm1307, %v1287, 0.0
    %v1372 = vsel %vm1308, %v1288, 0.0
    %v1373 = vsel %vm1307, %v1289, 0.0
    %v1374 = vsel %vm1308, %v1290, 0.0
    %v1375 = vsel %vm1307, %v1291, 0.0
    %v1376 = vsel %vm1308, %v1292, 0.0
    %v1377 = vsel %vm1307, %v1293, 0.0
    %v1378 = vsel %vm1308, %v1294, 0.0
    %v1379 = vsel %vm1307, %v1295, 0.0
    %v1380 = vsel %vm1308, %v1296, 0.0
    %v1381 = vsel %vm1307, %v1297, 0.0
    %v1382 = vsel %vm1308, %v1298, 0.0
    %v1383 = vsel %vm1307, %v1299, 0.0
    %v1384 = vsel %vm1308, %v1300, 0.0
    %v1385 = vsel %vm1307, %v1301, 0.0
    %v1386 = vsel %vm1308, %v1302, 0.0
    %v1387 = vsel %vm1307, %v1303, 0.0
    %v1388 = vsel %vm1308, %v1304, 0.0
    %v1389 = vmul.f32 %v1309, %v1309
    %v1390 = vmul.f32 %v1310, %v1310
    %v1391 = vmul.f32 %v1311, %v1311
    %v1392 = vmul.f32 %v1312, %v1312
    %v1393 = vmul.f32 %v1313, %v1313
    %v1394 = vmul.f32 %v1314, %v1314
    %v1395 = vmul.f32 %v1315, %v1315
    %v1396 = vmul.f32 %v1316, %v1316
    %v1397 = vmul.f32 %v1317, %v1317
    %v1398 = vmul.f32 %v1318, %v1318
    %v1399 = vmul.f32 %v1319, %v1319
    %v1400 = vmul.f32 %v1320, %v1320
    %v1401 = vmul.f32 %v1321, %v1321
    %v1402 = vmul.f32 %v1322, %v1322
    %v1403 = vmul.f32 %v1323, %v1323
    %v1404 = vmul.f32 %v1324, %v1324
    %v1405 = vmul.f32 %v1325, %v1325
    %v1406 = vmul.f32 %v1326, %v1326
    %v1407 = vmul.f32 %v1327, %v1327
    %v1408 = vmul.f32 %v1328, %v1328
    %v1409 = vmul.f32 %v1329, %v1329
    %v1410 = vmul.f32 %v1330, %v1330
    %v1411 = vmul.f32 %v1331, %v1331
    %v1412 = vmul.f32 %v1332, %v1332
    %v1413 = vmul.f32 %v1333, %v1333
    %v1414 = vmul.f32 %v1334, %v1334
    %v1415 = vmul.f32 %v1335, %v1335
    %v1416 = vmul.f32 %v1336, %v1336
    %v1417 = vmul.f32 %v1337, %v1337
    %v1418 = vmul.f32 %v1338, %v1338
    %v1419 = vmul.f32 %v1339, %v1339
    %v1420 = vmul.f32 %v1340, %v1340
    %v1421 = vmul.f32 %v1341, %v1341
    %v1422 = vmul.f32 %v1342, %v1342
    %v1423 = vmul.f32 %v1343, %v1343
    %v1424 = vmul.f32 %v1344, %v1344
    %v1425 = vmul.f32 %v1345, %v1345
    %v1426 = vmul.f32 %v1346, %v1346
    %v1427 = vmul.f32 %v1347, %v1347
    %v1428 = vmul.f32 %v1348, %v1348
    %v1429 = vmul.f32 %v1349, %v1349
    %v1430 = vmul.f32 %v1350, %v1350
    %v1431 = vmul.f32 %v1351, %v1351
    %v1432 = vmul.f32 %v1352, %v1352
    %v1433 = vmul.f32 %v1353, %v1353
    %v1434 = vmul.f32 %v1354, %v1354
    %v1435 = vmul.f32 %v1355, %v1355
    %v1436 = vmul.f32 %v1356, %v1356
    %v1437 = vmul.f32 %v1357, %v1357
    %v1438 = vmul.f32 %v1358, %v1358
    %v1439 = vmul.f32 %v1359, %v1359
    %v1440 = vmul.f32 %v1360, %v1360
    %v1441 = vmul.f32 %v1361, %v1361
    %v1442 = vmul.f32 %v1362, %v1362
    %v1443 = vmul.f32 %v1363, %v1363
    %v1444 = vmul.f32 %v1364, %v1364
    %v1445 = vmul.f32 %v1365, %v1365
    %v1446 = vmul.f32 %v1366, %v1366
    %v1447 = vmul.f32 %v1367, %v1367
    %v1448 = vmul.f32 %v1368, %v1368
    %v1449 = vmul.f32 %v1369, %v1369
    %v1450 = vmul.f32 %v1370, %v1370
    %v1451 = vmul.f32 %v1371, %v1371
    %v1452 = vmul.f32 %v1372, %v1372
    %v1453 = vmul.f32 %v1373, %v1373
    %v1454 = vmul.f32 %v1374, %v1374
    %v1455 = vmul.f32 %v1375, %v1375
    %v1456 = vmul.f32 %v1376, %v1376
    %v1457 = vmul.f32 %v1377, %v1377
    %v1458 = vmul.f32 %v1378, %v1378
    %v1459 = vmul.f32 %v1379, %v1379
    %v1460 = vmul.f32 %v1380, %v1380
    %v1461 = vmul.f32 %v1381, %v1381
    %v1462 = vmul.f32 %v1382, %v1382
    %v1463 = vmul.f32 %v1383, %v1383
    %v1464 = vmul.f32 %v1384, %v1384
    %v1465 = vmul.f32 %v1385, %v1385
    %v1466 = vmul.f32 %v1386, %v1386
    %v1467 = vmul.f32 %v1387, %v1387
    %v1468 = vmul.f32 %v1388, %v1388
    %v1469 = vadd.f32 %v1389, %v1390
    %1470 = vadd.xlane.f32.xlu0 %v1469
    %v1471 = vpop.xlane.xlu0 %1470
    %v1472 = vadd.f32 %v1391, %v1392
    %1473 = vadd.xlane.f32.xlu0 %v1472
    %v1474 = vpop.xlane.xlu0 %1473
    %v1475 = vadd.f32 %v1393, %v1394
    %1476 = vadd.xlane.f32.xlu0 %v1475
    %v1477 = vpop.xlane.xlu0 %1476
    %v1478 = vadd.f32 %v1395, %v1396
    %1479 = vadd.xlane.f32.xlu0 %v1478
    %v1480 = vpop.xlane.xlu0 %1479
    %v1481 = vadd.f32 %v1397, %v1398
    %1482 = vadd.xlane.f32.xlu0 %v1481
    %v1483 = vpop.xlane.xlu0 %1482
    %v1484 = vadd.f32 %v1399, %v1400
    %1485 = vadd.xlane.f32.xlu0 %v1484
    %v1486 = vpop.xlane.xlu0 %1485
    %v1487 = vadd.f32 %v1401, %v1402
    %1488 = vadd.xlane.f32.xlu0 %v1487
    %v1489 = vpop.xlane.xlu0 %1488
    %v1490 = vadd.f32 %v1403, %v1404
    %1491 = vadd.xlane.f32.xlu0 %v1490
    %v1492 = vpop.xlane.xlu0 %1491
    %v1493 = vadd.f32 %v1405, %v1406
    %1494 = vadd.xlane.f32.xlu0 %v1493
    %v1495 = vpop.xlane.xlu0 %1494
    %v1496 = vadd.f32 %v1407, %v1408
    %1497 = vadd.xlane.f32.xlu0 %v1496
    %v1498 = vpop.xlane.xlu0 %1497
    %v1499 = vadd.f32 %v1409, %v1410
    %1500 = vadd.xlane.f32.xlu0 %v1499
    %v1501 = vpop.xlane.xlu0 %1500
    %v1502 = vadd.f32 %v1411, %v1412
    %1503 = vadd.xlane.f32.xlu0 %v1502
    %v1504 = vpop.xlane.xlu0 %1503
    %v1505 = vadd.f32 %v1413, %v1414
    %1506 = vadd.xlane.f32.xlu0 %v1505
    %v1507 = vpop.xlane.xlu0 %1506
    %v1508 = vadd.f32 %v1415, %v1416
    %1509 = vadd.xlane.f32.xlu0 %v1508
    %v1510 = vpop.xlane.xlu0 %1509
    %v1511 = vadd.f32 %v1417, %v1418
    %1512 = vadd.xlane.f32.xlu0 %v1511
    %v1513 = vpop.xlane.xlu0 %1512
    %v1514 = vadd.f32 %v1419, %v1420
    %1515 = vadd.xlane.f32.xlu0 %v1514
    %v1516 = vpop.xlane.xlu0 %1515
    %v1517 = vadd.f32 %v1421, %v1422
    %1518 = vadd.xlane.f32.xlu0 %v1517
    %v1519 = vpop.xlane.xlu0 %1518
    %v1520 = vadd.f32 %v1423, %v1424
    %1521 = vadd.xlane.f32.xlu0 %v1520
    %v1522 = vpop.xlane.xlu0 %1521
    %v1523 = vadd.f32 %v1425, %v1426
    %1524 = vadd.xlane.f32.xlu0 %v1523
    %v1525 = vpop.xlane.xlu0 %1524
    %v1526 = vadd.f32 %v1427, %v1428
    %1527 = vadd.xlane.f32.xlu0 %v1526
    %v1528 = vpop.xlane.xlu0 %1527
    %v1529 = vadd.f32 %v1429, %v1430
    %1530 = vadd.xlane.f32.xlu0 %v1529
    %v1531 = vpop.xlane.xlu0 %1530
    %v1532 = vadd.f32 %v1431, %v1432
    %1533 = vadd.xlane.f32.xlu0 %v1532
    %v1534 = vpop.xlane.xlu0 %1533
    %v1535 = vadd.f32 %v1433, %v1434
    %1536 = vadd.xlane.f32.xlu0 %v1535
    %v1537 = vpop.xlane.xlu0 %1536
    %v1538 = vadd.f32 %v1435, %v1436
    %1539 = vadd.xlane.f32.xlu0 %v1538
    %v1540 = vpop.xlane.xlu0 %1539
    %v1541 = vadd.f32 %v1437, %v1438
    %1542 = vadd.xlane.f32.xlu0 %v1541
    %v1543 = vpop.xlane.xlu0 %1542
    %v1544 = vadd.f32 %v1439, %v1440
    %1545 = vadd.xlane.f32.xlu0 %v1544
    %v1546 = vpop.xlane.xlu0 %1545
    %v1547 = vadd.f32 %v1441, %v1442
    %1548 = vadd.xlane.f32.xlu0 %v1547
    %v1549 = vpop.xlane.xlu0 %1548
    %v1550 = vadd.f32 %v1443, %v1444
    %1551 = vadd.xlane.f32.xlu0 %v1550
    %v1552 = vpop.xlane.xlu0 %1551
    %v1553 = vadd.f32 %v1445, %v1446
    %1554 = vadd.xlane.f32.xlu0 %v1553
    %v1555 = vpop.xlane.xlu0 %1554
    %v1556 = vadd.f32 %v1447, %v1448
    %1557 = vadd.xlane.f32.xlu0 %v1556
    %v1558 = vpop.xlane.xlu0 %1557
    %v1559 = vadd.f32 %v1449, %v1450
    %1560 = vadd.xlane.f32.xlu0 %v1559
    %v1561 = vpop.xlane.xlu0 %1560
    %v1562 = vadd.f32 %v1451, %v1452
    %1563 = vadd.xlane.f32.xlu0 %v1562
    %v1564 = vpop.xlane.xlu0 %1563
    %v1565 = vadd.f32 %v1453, %v1454
    %1566 = vadd.xlane.f32.xlu0 %v1565
    %v1567 = vpop.xlane.xlu0 %1566
    %v1568 = vadd.f32 %v1455, %v1456
    %1569 = vadd.xlane.f32.xlu0 %v1568
    %v1570 = vpop.xlane.xlu0 %1569
    %v1571 = vadd.f32 %v1457, %v1458
    %1572 = vadd.xlane.f32.xlu0 %v1571
    %v1573 = vpop.xlane.xlu0 %1572
    %v1574 = vadd.f32 %v1459, %v1460
    %1575 = vadd.xlane.f32.xlu0 %v1574
    %v1576 = vpop.xlane.xlu0 %1575
    %v1577 = vadd.f32 %v1461, %v1462
    %1578 = vadd.xlane.f32.xlu0 %v1577
    %v1579 = vpop.xlane.xlu0 %1578
    %v1580 = vadd.f32 %v1463, %v1464
    %1581 = vadd.xlane.f32.xlu0 %v1580
    %v1582 = vpop.xlane.xlu0 %1581
    %v1583 = vadd.f32 %v1465, %v1466
    %1584 = vadd.xlane.f32.xlu0 %v1583
    %v1585 = vpop.xlane.xlu0 %1584
    %v1586 = vadd.f32 %v1467, %v1468
    %1587 = vadd.xlane.f32.xlu0 %v1586
    %v1588 = vpop.xlane.xlu0 %1587
    %v1589 = vmul.f32 %v1471, 0.0051020407
    %v1590 = vmul.f32 %v1474, 0.0051020407
    %v1591 = vmul.f32 %v1477, 0.0051020407
    %v1592 = vmul.f32 %v1480, 0.0051020407
    %v1593 = vmul.f32 %v1483, 0.0051020407
    %v1594 = vmul.f32 %v1486, 0.0051020407
    %v1595 = vmul.f32 %v1489, 0.0051020407
    %v1596 = vmul.f32 %v1492, 0.0051020407
    %v1597 = vmul.f32 %v1495, 0.0051020407
    %v1598 = vmul.f32 %v1498, 0.0051020407
    %v1599 = vmul.f32 %v1501, 0.0051020407
    %v1600 = vmul.f32 %v1504, 0.0051020407
    %v1601 = vmul.f32 %v1507, 0.0051020407
    %v1602 = vmul.f32 %v1510, 0.0051020407
    %v1603 = vmul.f32 %v1513, 0.0051020407
    %v1604 = vmul.f32 %v1516, 0.0051020407
    %v1605 = vmul.f32 %v1519, 0.0051020407
    %v1606 = vmul.f32 %v1522, 0.0051020407
    %v1607 = vmul.f32 %v1525, 0.0051020407
    %v1608 = vmul.f32 %v1528, 0.0051020407
    %v1609 = vmul.f32 %v1531, 0.0051020407
    %v1610 = vmul.f32 %v1534, 0.0051020407
    %v1611 = vmul.f32 %v1537, 0.0051020407
    %v1612 = vmul.f32 %v1540, 0.0051020407
    %v1613 = vmul.f32 %v1543, 0.0051020407
    %v1614 = vmul.f32 %v1546, 0.0051020407
    %v1615 = vmul.f32 %v1549, 0.0051020407
    %v1616 = vmul.f32 %v1552, 0.0051020407
    %v1617 = vmul.f32 %v1555, 0.0051020407
    %v1618 = vmul.f32 %v1558, 0.0051020407
    %v1619 = vmul.f32 %v1561, 0.0051020407
    %v1620 = vmul.f32 %v1564, 0.0051020407
    %v1621 = vmul.f32 %v1567, 0.0051020407
    %v1622 = vmul.f32 %v1570, 0.0051020407
    %v1623 = vmul.f32 %v1573, 0.0051020407
    %v1624 = vmul.f32 %v1576, 0.0051020407
    %v1625 = vmul.f32 %v1579, 0.0051020407
    %v1626 = vmul.f32 %v1582, 0.0051020407
    %v1627 = vmul.f32 %v1585, 0.0051020407
    %v1628 = vmul.f32 %v1588, 0.0051020407
    %v1629 = vld [vmem:[%s2] sm:$0xff]
    %v1630 = vld [vmem:[%s2 + $0x8] sm:$0xff]
    %v1631 = vld [vmem:[%s2 + $0x10] sm:$0xff]
    %v1632 = vld [vmem:[%s2 + $0x18] sm:$0xff]
    %v1633 = vld [vmem:[%s2 + $0x20] sm:$0xff]
    %v1634 = vld [vmem:[%s2 + $0x28] sm:$0xff]
    %v1635 = vld [vmem:[%s2 + $0x30] sm:$0xff]
    %v1636 = vld [vmem:[%s2 + $0x38] sm:$0xff]
    %v1637 = vld [vmem:[%s2 + $0x40] sm:$0xff]
    %v1638 = vld [vmem:[%s2 + $0x48] sm:$0xff]
    %v1639 = vld [vmem:[%s2 + $0x50] sm:$0xff]
    %v1640 = vld [vmem:[%s2 + $0x58] sm:$0xff]
    %v1641 = vld [vmem:[%s2 + $0x60] sm:$0xff]
    %v1642 = vld [vmem:[%s2 + $0x68] sm:$0xff]
    %v1643 = vld [vmem:[%s2 + $0x70] sm:$0xff]
    %v1644 = vld [vmem:[%s2 + $0x78] sm:$0xff]
    %v1645 = vld [vmem:[%s2 + $0x80] sm:$0xff]
    %v1646 = vld [vmem:[%s2 + $0x88] sm:$0xff]
    %v1647 = vld [vmem:[%s2 + $0x90] sm:$0xff]
    %v1648 = vld [vmem:[%s2 + $0x98] sm:$0xff]
    %v1649 = vld [vmem:[%s2 + $0xa0] sm:$0xff]
    %v1650 = vld [vmem:[%s2 + $0xa8] sm:$0xff]
    %v1651 = vld [vmem:[%s2 + $0xb0] sm:$0xff]
    %v1652 = vld [vmem:[%s2 + $0xb8] sm:$0xff]
    %v1653 = vld [vmem:[%s2 + $0xc0] sm:$0xff]
    %v1654 = vld [vmem:[%s2 + $0xc8] sm:$0xff]
    %v1655 = vld [vmem:[%s2 + $0xd0] sm:$0xff]
    %v1656 = vld [vmem:[%s2 + $0xd8] sm:$0xff]
    %v1657 = vld [vmem:[%s2 + $0xe0] sm:$0xff]
    %v1658 = vld [vmem:[%s2 + $0xe8] sm:$0xff]
    %v1659 = vld [vmem:[%s2 + $0xf0] sm:$0xff]
    %v1660 = vld [vmem:[%s2 + $0xf8] sm:$0xff]
    %v1661 = vld [vmem:[%s2 + $0x100] sm:$0xff]
    %v1662 = vld [vmem:[%s2 + $0x108] sm:$0xff]
    %v1663 = vld [vmem:[%s2 + $0x110] sm:$0xff]
    %v1664 = vld [vmem:[%s2 + $0x118] sm:$0xff]
    %v1665 = vld [vmem:[%s2 + $0x120] sm:$0xff]
    %v1666 = vld [vmem:[%s2 + $0x128] sm:$0xff]
    %v1667 = vld [vmem:[%s2 + $0x130] sm:$0xff]
    %v1668 = vld [vmem:[%s2 + $0x138] sm:$0xff]
    %v1669 = vadd.f32 %v1589, 1e-05
    %v1670 = vadd.f32 %v1590, 1e-05
    %v1671 = vadd.f32 %v1591, 1e-05
    %v1672 = vadd.f32 %v1592, 1e-05
    %v1673 = vadd.f32 %v1593, 1e-05
    %v1674 = vadd.f32 %v1594, 1e-05
    %v1675 = vadd.f32 %v1595, 1e-05
    %v1676 = vadd.f32 %v1596, 1e-05
    %v1677 = vadd.f32 %v1597, 1e-05
    %v1678 = vadd.f32 %v1598, 1e-05
    %v1679 = vadd.f32 %v1599, 1e-05
    %v1680 = vadd.f32 %v1600, 1e-05
    %v1681 = vadd.f32 %v1601, 1e-05
    %v1682 = vadd.f32 %v1602, 1e-05
    %v1683 = vadd.f32 %v1603, 1e-05
    %v1684 = vadd.f32 %v1604, 1e-05
    %v1685 = vadd.f32 %v1605, 1e-05
    %v1686 = vadd.f32 %v1606, 1e-05
    %v1687 = vadd.f32 %v1607, 1e-05
    %v1688 = vadd.f32 %v1608, 1e-05
    %v1689 = vadd.f32 %v1609, 1e-05
    %v1690 = vadd.f32 %v1610, 1e-05
    %v1691 = vadd.f32 %v1611, 1e-05
    %v1692 = vadd.f32 %v1612, 1e-05
    %v1693 = vadd.f32 %v1613, 1e-05
    %v1694 = vadd.f32 %v1614, 1e-05
    %v1695 = vadd.f32 %v1615, 1e-05
    %v1696 = vadd.f32 %v1616, 1e-05
    %v1697 = vadd.f32 %v1617, 1e-05
    %v1698 = vadd.f32 %v1618, 1e-05
    %v1699 = vadd.f32 %v1619, 1e-05
    %v1700 = vadd.f32 %v1620, 1e-05
    %v1701 = vadd.f32 %v1621, 1e-05
    %v1702 = vadd.f32 %v1622, 1e-05
    %v1703 = vadd.f32 %v1623, 1e-05
    %v1704 = vadd.f32 %v1624, 1e-05
    %v1705 = vadd.f32 %v1625, 1e-05
    %v1706 = vadd.f32 %v1626, 1e-05
    %v1707 = vadd.f32 %v1627, 1e-05
    %v1708 = vadd.f32 %v1628, 1e-05
    %v1709 = vrsqrt.pop %v1669
    %v1710 = vrsqrt.pop %v1670
    %v1711 = vrsqrt.pop %v1671
    %v1712 = vrsqrt.pop %v1672
    %v1713 = vrsqrt.pop %v1673
    %v1714 = vrsqrt.pop %v1674
    %v1715 = vrsqrt.pop %v1675
    %v1716 = vrsqrt.pop %v1676
    %v1717 = vrsqrt.pop %v1677
    %v1718 = vrsqrt.pop %v1678
    %v1719 = vrsqrt.pop %v1679
    %v1720 = vrsqrt.pop %v1680
    %v1721 = vrsqrt.pop %v1681
    %v1722 = vrsqrt.pop %v1682
    %v1723 = vrsqrt.pop %v1683
    %v1724 = vrsqrt.pop %v1684
    %v1725 = vrsqrt.pop %v1685
    %v1726 = vrsqrt.pop %v1686
    %v1727 = vrsqrt.pop %v1687
    %v1728 = vrsqrt.pop %v1688
    %v1729 = vrsqrt.pop %v1689
    %v1730 = vrsqrt.pop %v1690
    %v1731 = vrsqrt.pop %v1691
    %v1732 = vrsqrt.pop %v1692
    %v1733 = vrsqrt.pop %v1693
    %v1734 = vrsqrt.pop %v1694
    %v1735 = vrsqrt.pop %v1695
    %v1736 = vrsqrt.pop %v1696
    %v1737 = vrsqrt.pop %v1697
    %v1738 = vrsqrt.pop %v1698
    %v1739 = vrsqrt.pop %v1699
    %v1740 = vrsqrt.pop %v1700
    %v1741 = vrsqrt.pop %v1701
    %v1742 = vrsqrt.pop %v1702
    %v1743 = vrsqrt.pop %v1703
    %v1744 = vrsqrt.pop %v1704
    %v1745 = vrsqrt.pop %v1705
    %v1746 = vrsqrt.pop %v1706
    %v1747 = vrsqrt.pop %v1707
    %v1748 = vrsqrt.pop %v1708
    %v1749 = vmul.f32 %v1629, %v1709
    %v1750 = vmul.f32 %v1630, %v1710
    %v1751 = vmul.f32 %v1631, %v1711
    %v1752 = vmul.f32 %v1632, %v1712
    %v1753 = vmul.f32 %v1633, %v1713
    %v1754 = vmul.f32 %v1634, %v1714
    %v1755 = vmul.f32 %v1635, %v1715
    %v1756 = vmul.f32 %v1636, %v1716
    %v1757 = vmul.f32 %v1637, %v1717
    %v1758 = vmul.f32 %v1638, %v1718
    %v1759 = vmul.f32 %v1639, %v1719
    %v1760 = vmul.f32 %v1640, %v1720
    %v1761 = vmul.f32 %v1641, %v1721
    %v1762 = vmul.f32 %v1642, %v1722
    %v1763 = vmul.f32 %v1643, %v1723
    %v1764 = vmul.f32 %v1644, %v1724
    %v1765 = vmul.f32 %v1645, %v1725
    %v1766 = vmul.f32 %v1646, %v1726
    %v1767 = vmul.f32 %v1647, %v1727
    %v1768 = vmul.f32 %v1648, %v1728
    %v1769 = vmul.f32 %v1649, %v1729
    %v1770 = vmul.f32 %v1650, %v1730
    %v1771 = vmul.f32 %v1651, %v1731
    %v1772 = vmul.f32 %v1652, %v1732
    %v1773 = vmul.f32 %v1653, %v1733
    %v1774 = vmul.f32 %v1654, %v1734
    %v1775 = vmul.f32 %v1655, %v1735
    %v1776 = vmul.f32 %v1656, %v1736
    %v1777 = vmul.f32 %v1657, %v1737
    %v1778 = vmul.f32 %v1658, %v1738
    %v1779 = vmul.f32 %v1659, %v1739
    %v1780 = vmul.f32 %v1660, %v1740
    %v1781 = vmul.f32 %v1661, %v1741
    %v1782 = vmul.f32 %v1662, %v1742
    %v1783 = vmul.f32 %v1663, %v1743
    %v1784 = vmul.f32 %v1664, %v1744
    %v1785 = vmul.f32 %v1665, %v1745
    %v1786 = vmul.f32 %v1666, %v1746
    %v1787 = vmul.f32 %v1667, %v1747
    %v1788 = vmul.f32 %v1668, %v1748
    %v1789 = vld [vmem:[%s3] sm:$0xff]
    %v1790 = vld [vmem:[%s3 + $0x8] sm:$0xff]
    %v1791 = vld [vmem:[%s3 + $0x10] sm:$0xff]
    %v1792 = vld [vmem:[%s3 + $0x18] sm:$0xff]
    %v1793 = vld [vmem:[%s3 + $0x20] sm:$0xff]
    %v1794 = vld [vmem:[%s3 + $0x28] sm:$0xff]
    %v1795 = vld [vmem:[%s3 + $0x30] sm:$0xff]
    %v1796 = vld [vmem:[%s3 + $0x38] sm:$0xff]
    %v1797 = vld [vmem:[%s3 + $0x40] sm:$0xff]
    %v1798 = vld [vmem:[%s3 + $0x48] sm:$0xff]
    %v1799 = vld [vmem:[%s3 + $0x50] sm:$0xff]
    %v1800 = vld [vmem:[%s3 + $0x58] sm:$0xff]
    %v1801 = vld [vmem:[%s3 + $0x60] sm:$0xff]
    %v1802 = vld [vmem:[%s3 + $0x68] sm:$0xff]
    %v1803 = vld [vmem:[%s3 + $0x70] sm:$0xff]
    %v1804 = vld [vmem:[%s3 + $0x78] sm:$0xff]
    %v1805 = vld [vmem:[%s3 + $0x80] sm:$0xff]
    %v1806 = vld [vmem:[%s3 + $0x88] sm:$0xff]
    %v1807 = vld [vmem:[%s3 + $0x90] sm:$0xff]
    %v1808 = vld [vmem:[%s3 + $0x98] sm:$0xff]
    %v1809 = vld [vmem:[%s3 + $0xa0] sm:$0xff]
    %v1810 = vld [vmem:[%s3 + $0xa8] sm:$0xff]
    %v1811 = vld [vmem:[%s3 + $0xb0] sm:$0xff]
    %v1812 = vld [vmem:[%s3 + $0xb8] sm:$0xff]
    %v1813 = vld [vmem:[%s3 + $0xc0] sm:$0xff]
    %v1814 = vld [vmem:[%s3 + $0xc8] sm:$0xff]
    %v1815 = vld [vmem:[%s3 + $0xd0] sm:$0xff]
    %v1816 = vld [vmem:[%s3 + $0xd8] sm:$0xff]
    %v1817 = vld [vmem:[%s3 + $0xe0] sm:$0xff]
    %v1818 = vld [vmem:[%s3 + $0xe8] sm:$0xff]
    %v1819 = vld [vmem:[%s3 + $0xf0] sm:$0xff]
    %v1820 = vld [vmem:[%s3 + $0xf8] sm:$0xff]
    %v1821 = vld [vmem:[%s3 + $0x100] sm:$0xff]
    %v1822 = vld [vmem:[%s3 + $0x108] sm:$0xff]
    %v1823 = vld [vmem:[%s3 + $0x110] sm:$0xff]
    %v1824 = vld [vmem:[%s3 + $0x118] sm:$0xff]
    %v1825 = vld [vmem:[%s3 + $0x120] sm:$0xff]
    %v1826 = vld [vmem:[%s3 + $0x128] sm:$0xff]
    %v1827 = vld [vmem:[%s3 + $0x130] sm:$0xff]
    %v1828 = vld [vmem:[%s3 + $0x138] sm:$0xff]
    %v1829 = vmul.f32 %v1180, %v1749
    %v1830 = vmul.f32 %v1181, %v1750
    %v1831 = vmul.f32 %v1182, %v1751
    %v1832 = vmul.f32 %v1183, %v1752
    %v1833 = vmul.f32 %v1184, %v1753
    %v1834 = vmul.f32 %v1185, %v1754
    %v1835 = vmul.f32 %v1186, %v1755
    %v1836 = vmul.f32 %v1187, %v1756
    %v1837 = vmul.f32 %v1188, %v1757
    %v1838 = vmul.f32 %v1189, %v1758
    %v1839 = vmul.f32 %v1190, %v1759
    %v1840 = vmul.f32 %v1191, %v1760
    %v1841 = vmul.f32 %v1192, %v1761
    %v1842 = vmul.f32 %v1193, %v1762
    %v1843 = vmul.f32 %v1194, %v1763
    %v1844 = vmul.f32 %v1195, %v1764
    %v1845 = vmul.f32 %v1196, %v1765
    %v1846 = vmul.f32 %v1197, %v1766
    %v1847 = vmul.f32 %v1198, %v1767
    %v1848 = vmul.f32 %v1199, %v1768
    %v1849 = vmul.f32 %v1200, %v1769
    %v1850 = vmul.f32 %v1201, %v1770
    %v1851 = vmul.f32 %v1202, %v1771
    %v1852 = vmul.f32 %v1203, %v1772
    %v1853 = vmul.f32 %v1204, %v1773
    %v1854 = vmul.f32 %v1205, %v1774
    %v1855 = vmul.f32 %v1206, %v1775
    %v1856 = vmul.f32 %v1207, %v1776
    %v1857 = vmul.f32 %v1208, %v1777
    %v1858 = vmul.f32 %v1209, %v1778
    %v1859 = vmul.f32 %v1210, %v1779
    %v1860 = vmul.f32 %v1211, %v1780
    %v1861 = vmul.f32 %v1212, %v1781
    %v1862 = vmul.f32 %v1213, %v1782
    %v1863 = vmul.f32 %v1214, %v1783
    %v1864 = vmul.f32 %v1215, %v1784
    %v1865 = vmul.f32 %v1216, %v1785
    %v1866 = vmul.f32 %v1217, %v1786
    %v1867 = vmul.f32 %v1218, %v1787
    %v1868 = vmul.f32 %v1219, %v1788
    %v1869 = vsub.f32 %v1789, %v1829
    %v1870 = vsub.f32 %v1790, %v1830
    %v1871 = vsub.f32 %v1791, %v1831
    %v1872 = vsub.f32 %v1792, %v1832
    %v1873 = vsub.f32 %v1793, %v1833
    %v1874 = vsub.f32 %v1794, %v1834
    %v1875 = vsub.f32 %v1795, %v1835
    %v1876 = vsub.f32 %v1796, %v1836
    %v1877 = vsub.f32 %v1797, %v1837
    %v1878 = vsub.f32 %v1798, %v1838
    %v1879 = vsub.f32 %v1799, %v1839
    %v1880 = vsub.f32 %v1800, %v1840
    %v1881 = vsub.f32 %v1801, %v1841
    %v1882 = vsub.f32 %v1802, %v1842
    %v1883 = vsub.f32 %v1803, %v1843
    %v1884 = vsub.f32 %v1804, %v1844
    %v1885 = vsub.f32 %v1805, %v1845
    %v1886 = vsub.f32 %v1806, %v1846
    %v1887 = vsub.f32 %v1807, %v1847
    %v1888 = vsub.f32 %v1808, %v1848
    %v1889 = vsub.f32 %v1809, %v1849
    %v1890 = vsub.f32 %v1810, %v1850
    %v1891 = vsub.f32 %v1811, %v1851
    %v1892 = vsub.f32 %v1812, %v1852
    %v1893 = vsub.f32 %v1813, %v1853
    %v1894 = vsub.f32 %v1814, %v1854
    %v1895 = vsub.f32 %v1815, %v1855
    %v1896 = vsub.f32 %v1816, %v1856
    %v1897 = vsub.f32 %v1817, %v1857
    %v1898 = vsub.f32 %v1818, %v1858
    %v1899 = vsub.f32 %v1819, %v1859
    %v1900 = vsub.f32 %v1820, %v1860
    %v1901 = vsub.f32 %v1821, %v1861
    %v1902 = vsub.f32 %v1822, %v1862
    %v1903 = vsub.f32 %v1823, %v1863
    %v1904 = vsub.f32 %v1824, %v1864
    %v1905 = vsub.f32 %v1825, %v1865
    %v1906 = vsub.f32 %v1826, %v1866
    %v1907 = vsub.f32 %v1827, %v1867
    %v1908 = vsub.f32 %v1828, %v1868
    %1910 = vset.pattern.permute.xlu0 0
    %1911 = vperm.xlu0 %1910, %v1749
    %v1912 = vpop.permute.xlu0 %1911
    %1915 = vset.pattern.permute.xlu0 0
    %1916 = vperm.xlu0 %1915, %v1750
    %v1917 = vpop.permute.xlu0 %1916
    %1920 = vset.pattern.permute.xlu0 0
    %1921 = vperm.xlu0 %1920, %v1751
    %v1922 = vpop.permute.xlu0 %1921
    %1925 = vset.pattern.permute.xlu0 0
    %1926 = vperm.xlu0 %1925, %v1752
    %v1927 = vpop.permute.xlu0 %1926
    %1930 = vset.pattern.permute.xlu0 0
    %1931 = vperm.xlu0 %1930, %v1753
    %v1932 = vpop.permute.xlu0 %1931
    %1935 = vset.pattern.permute.xlu0 0
    %1936 = vperm.xlu0 %1935, %v1754
    %v1937 = vpop.permute.xlu0 %1936
    %1940 = vset.pattern.permute.xlu0 0
    %1941 = vperm.xlu0 %1940, %v1755
    %v1942 = vpop.permute.xlu0 %1941
    %1945 = vset.pattern.permute.xlu0 0
    %1946 = vperm.xlu0 %1945, %v1756
    %v1947 = vpop.permute.xlu0 %1946
    %1950 = vset.pattern.permute.xlu0 0
    %1951 = vperm.xlu0 %1950, %v1757
    %v1952 = vpop.permute.xlu0 %1951
    %1955 = vset.pattern.permute.xlu0 0
    %1956 = vperm.xlu0 %1955, %v1758
    %v1957 = vpop.permute.xlu0 %1956
    %1960 = vset.pattern.permute.xlu0 0
    %1961 = vperm.xlu0 %1960, %v1759
    %v1962 = vpop.permute.xlu0 %1961
    %1965 = vset.pattern.permute.xlu0 0
    %1966 = vperm.xlu0 %1965, %v1760
    %v1967 = vpop.permute.xlu0 %1966
    %1970 = vset.pattern.permute.xlu0 0
    %1971 = vperm.xlu0 %1970, %v1761
    %v1972 = vpop.permute.xlu0 %1971
    %1975 = vset.pattern.permute.xlu0 0
    %1976 = vperm.xlu0 %1975, %v1762
    %v1977 = vpop.permute.xlu0 %1976
    %1980 = vset.pattern.permute.xlu0 0
    %1981 = vperm.xlu0 %1980, %v1763
    %v1982 = vpop.permute.xlu0 %1981
    %1985 = vset.pattern.permute.xlu0 0
    %1986 = vperm.xlu0 %1985, %v1764
    %v1987 = vpop.permute.xlu0 %1986
    %1990 = vset.pattern.permute.xlu0 0
    %1991 = vperm.xlu0 %1990, %v1765
    %v1992 = vpop.permute.xlu0 %1991
    %1995 = vset.pattern.permute.xlu0 0
    %1996 = vperm.xlu0 %1995, %v1766
    %v1997 = vpop.permute.xlu0 %1996
    %2000 = vset.pattern.permute.xlu0 0
    %2001 = vperm.xlu0 %2000, %v1767
    %v2002 = vpop.permute.xlu0 %2001
    %2005 = vset.pattern.permute.xlu0 0
    %2006 = vperm.xlu0 %2005, %v1768
    %v2007 = vpop.permute.xlu0 %2006
    %2010 = vset.pattern.permute.xlu0 0
    %2011 = vperm.xlu0 %2010, %v1769
    %v2012 = vpop.permute.xlu0 %2011
    %2015 = vset.pattern.permute.xlu0 0
    %2016 = vperm.xlu0 %2015, %v1770
    %v2017 = vpop.permute.xlu0 %2016
    %2020 = vset.pattern.permute.xlu0 0
    %2021 = vperm.xlu0 %2020, %v1771
    %v2022 = vpop.permute.xlu0 %2021
    %2025 = vset.pattern.permute.xlu0 0
    %2026 = vperm.xlu0 %2025, %v1772
    %v2027 = vpop.permute.xlu0 %2026
    %2030 = vset.pattern.permute.xlu0 0
    %2031 = vperm.xlu0 %2030, %v1773
    %v2032 = vpop.permute.xlu0 %2031
    %2035 = vset.pattern.permute.xlu0 0
    %2036 = vperm.xlu0 %2035, %v1774
    %v2037 = vpop.permute.xlu0 %2036
    %2040 = vset.pattern.permute.xlu0 0
    %2041 = vperm.xlu0 %2040, %v1775
    %v2042 = vpop.permute.xlu0 %2041
    %2045 = vset.pattern.permute.xlu0 0
    %2046 = vperm.xlu0 %2045, %v1776
    %v2047 = vpop.permute.xlu0 %2046
    %2050 = vset.pattern.permute.xlu0 0
    %2051 = vperm.xlu0 %2050, %v1777
    %v2052 = vpop.permute.xlu0 %2051
    %2055 = vset.pattern.permute.xlu0 0
    %2056 = vperm.xlu0 %2055, %v1778
    %v2057 = vpop.permute.xlu0 %2056
    %2060 = vset.pattern.permute.xlu0 0
    %2061 = vperm.xlu0 %2060, %v1779
    %v2062 = vpop.permute.xlu0 %2061
    %2065 = vset.pattern.permute.xlu0 0
    %2066 = vperm.xlu0 %2065, %v1780
    %v2067 = vpop.permute.xlu0 %2066
    %2070 = vset.pattern.permute.xlu0 0
    %2071 = vperm.xlu0 %2070, %v1781
    %v2072 = vpop.permute.xlu0 %2071
    %2075 = vset.pattern.permute.xlu0 0
    %2076 = vperm.xlu0 %2075, %v1782
    %v2077 = vpop.permute.xlu0 %2076
    %2080 = vset.pattern.permute.xlu0 0
    %2081 = vperm.xlu0 %2080, %v1783
    %v2082 = vpop.permute.xlu0 %2081
    %2085 = vset.pattern.permute.xlu0 0
    %2086 = vperm.xlu0 %2085, %v1784
    %v2087 = vpop.permute.xlu0 %2086
    %2090 = vset.pattern.permute.xlu0 0
    %2091 = vperm.xlu0 %2090, %v1785
    %v2092 = vpop.permute.xlu0 %2091
    %2095 = vset.pattern.permute.xlu0 0
    %2096 = vperm.xlu0 %2095, %v1786
    %v2097 = vpop.permute.xlu0 %2096
    %2100 = vset.pattern.permute.xlu0 0
    %2101 = vperm.xlu0 %2100, %v1787
    %v2102 = vpop.permute.xlu0 %2101
    %2105 = vset.pattern.permute.xlu0 0
    %2106 = vperm.xlu0 %2105, %v1788
    %v2107 = vpop.permute.xlu0 %2106
    %v2109 = vmul.f32 %v862, %v1912
    %v2110 = vmul.f32 %v864, %v1912
    %v2111 = vmul.f32 %v866, %v1917
    %v2112 = vmul.f32 %v868, %v1917
    %v2113 = vmul.f32 %v872, %v1922
    %v2114 = vmul.f32 %v874, %v1922
    %v2115 = vmul.f32 %v876, %v1927
    %v2116 = vmul.f32 %v878, %v1927
    %v2117 = vmul.f32 %v882, %v1932
    %v2118 = vmul.f32 %v884, %v1932
    %v2119 = vmul.f32 %v886, %v1937
    %v2120 = vmul.f32 %v888, %v1937
    %v2121 = vmul.f32 %v892, %v1942
    %v2122 = vmul.f32 %v894, %v1942
    %v2123 = vmul.f32 %v896, %v1947
    %v2124 = vmul.f32 %v898, %v1947
    %v2125 = vmul.f32 %v902, %v1952
    %v2126 = vmul.f32 %v904, %v1952
    %v2127 = vmul.f32 %v906, %v1957
    %v2128 = vmul.f32 %v908, %v1957
    %v2129 = vmul.f32 %v912, %v1962
    %v2130 = vmul.f32 %v914, %v1962
    %v2131 = vmul.f32 %v916, %v1967
    %v2132 = vmul.f32 %v918, %v1967
    %v2133 = vmul.f32 %v922, %v1972
    %v2134 = vmul.f32 %v924, %v1972
    %v2135 = vmul.f32 %v926, %v1977
    %v2136 = vmul.f32 %v928, %v1977
    %v2137 = vmul.f32 %v932, %v1982
    %v2138 = vmul.f32 %v934, %v1982
    %v2139 = vmul.f32 %v936, %v1987
    %v2140 = vmul.f32 %v938, %v1987
    %v2141 = vmul.f32 %v942, %v1992
    %v2142 = vmul.f32 %v944, %v1992
    %v2143 = vmul.f32 %v946, %v1997
    %v2144 = vmul.f32 %v948, %v1997
    %v2145 = vmul.f32 %v952, %v2002
    %v2146 = vmul.f32 %v954, %v2002
    %v2147 = vmul.f32 %v956, %v2007
    %v2148 = vmul.f32 %v958, %v2007
    %v2149 = vmul.f32 %v962, %v2012
    %v2150 = vmul.f32 %v964, %v2012
    %v2151 = vmul.f32 %v966, %v2017
    %v2152 = vmul.f32 %v968, %v2017
    %v2153 = vmul.f32 %v972, %v2022
    %v2154 = vmul.f32 %v974, %v2022
    %v2155 = vmul.f32 %v976, %v2027
    %v2156 = vmul.f32 %v978, %v2027
    %v2157 = vmul.f32 %v982, %v2032
    %v2158 = vmul.f32 %v984, %v2032
    %v2159 = vmul.f32 %v986, %v2037
    %v2160 = vmul.f32 %v988, %v2037
    %v2161 = vmul.f32 %v992, %v2042
    %v2162 = vmul.f32 %v994, %v2042
    %v2163 = vmul.f32 %v996, %v2047
    %v2164 = vmul.f32 %v998, %v2047
    %v2165 = vmul.f32 %v1002, %v2052
    %v2166 = vmul.f32 %v1004, %v2052
    %v2167 = vmul.f32 %v1006, %v2057
    %v2168 = vmul.f32 %v1008, %v2057
    %v2169 = vmul.f32 %v1012, %v2062
    %v2170 = vmul.f32 %v1014, %v2062
    %v2171 = vmul.f32 %v1016, %v2067
    %v2172 = vmul.f32 %v1018, %v2067
    %v2173 = vmul.f32 %v1022, %v2072
    %v2174 = vmul.f32 %v1024, %v2072
    %v2175 = vmul.f32 %v1026, %v2077
    %v2176 = vmul.f32 %v1028, %v2077
    %v2177 = vmul.f32 %v1032, %v2082
    %v2178 = vmul.f32 %v1034, %v2082
    %v2179 = vmul.f32 %v1036, %v2087
    %v2180 = vmul.f32 %v1038, %v2087
    %v2181 = vmul.f32 %v1042, %v2092
    %v2182 = vmul.f32 %v1044, %v2092
    %v2183 = vmul.f32 %v1046, %v2097
    %v2184 = vmul.f32 %v1048, %v2097
    %v2185 = vmul.f32 %v1052, %v2102
    %v2186 = vmul.f32 %v1054, %v2102
    %v2187 = vmul.f32 %v1056, %v2107
    %v2188 = vmul.f32 %v1058, %v2107
    %2190 = vset.pattern.permute.xlu0 0
    %2191 = vperm.xlu0 %2190, %v1869
    %v2192 = vpop.permute.xlu0 %2191
    %2195 = vset.pattern.permute.xlu0 0
    %2196 = vperm.xlu0 %2195, %v1870
    %v2197 = vpop.permute.xlu0 %2196
    %2200 = vset.pattern.permute.xlu0 0
    %2201 = vperm.xlu0 %2200, %v1871
    %v2202 = vpop.permute.xlu0 %2201
    %2205 = vset.pattern.permute.xlu0 0
    %2206 = vperm.xlu0 %2205, %v1872
    %v2207 = vpop.permute.xlu0 %2206
    %2210 = vset.pattern.permute.xlu0 0
    %2211 = vperm.xlu0 %2210, %v1873
    %v2212 = vpop.permute.xlu0 %2211
    %2215 = vset.pattern.permute.xlu0 0
    %2216 = vperm.xlu0 %2215, %v1874
    %v2217 = vpop.permute.xlu0 %2216
    %2220 = vset.pattern.permute.xlu0 0
    %2221 = vperm.xlu0 %2220, %v1875
    %v2222 = vpop.permute.xlu0 %2221
    %2225 = vset.pattern.permute.xlu0 0
    %2226 = vperm.xlu0 %2225, %v1876
    %v2227 = vpop.permute.xlu0 %2226
    %2230 = vset.pattern.permute.xlu0 0
    %2231 = vperm.xlu0 %2230, %v1877
    %v2232 = vpop.permute.xlu0 %2231
    %2235 = vset.pattern.permute.xlu0 0
    %2236 = vperm.xlu0 %2235, %v1878
    %v2237 = vpop.permute.xlu0 %2236
    %2240 = vset.pattern.permute.xlu0 0
    %2241 = vperm.xlu0 %2240, %v1879
    %v2242 = vpop.permute.xlu0 %2241
    %2245 = vset.pattern.permute.xlu0 0
    %2246 = vperm.xlu0 %2245, %v1880
    %v2247 = vpop.permute.xlu0 %2246
    %2250 = vset.pattern.permute.xlu0 0
    %2251 = vperm.xlu0 %2250, %v1881
    %v2252 = vpop.permute.xlu0 %2251
    %2255 = vset.pattern.permute.xlu0 0
    %2256 = vperm.xlu0 %2255, %v1882
    %v2257 = vpop.permute.xlu0 %2256
    %2260 = vset.pattern.permute.xlu0 0
    %2261 = vperm.xlu0 %2260, %v1883
    %v2262 = vpop.permute.xlu0 %2261
    %2265 = vset.pattern.permute.xlu0 0
    %2266 = vperm.xlu0 %2265, %v1884
    %v2267 = vpop.permute.xlu0 %2266
    %2270 = vset.pattern.permute.xlu0 0
    %2271 = vperm.xlu0 %2270, %v1885
    %v2272 = vpop.permute.xlu0 %2271
    %2275 = vset.pattern.permute.xlu0 0
    %2276 = vperm.xlu0 %2275, %v1886
    %v2277 = vpop.permute.xlu0 %2276
    %2280 = vset.pattern.permute.xlu0 0
    %2281 = vperm.xlu0 %2280, %v1887
    %v2282 = vpop.permute.xlu0 %2281
    %2285 = vset.pattern.permute.xlu0 0
    %2286 = vperm.xlu0 %2285, %v1888
    %v2287 = vpop.permute.xlu0 %2286
    %2290 = vset.pattern.permute.xlu0 0
    %2291 = vperm.xlu0 %2290, %v1889
    %v2292 = vpop.permute.xlu0 %2291
    %2295 = vset.pattern.permute.xlu0 0
    %2296 = vperm.xlu0 %2295, %v1890
    %v2297 = vpop.permute.xlu0 %2296
    %2300 = vset.pattern.permute.xlu0 0
    %2301 = vperm.xlu0 %2300, %v1891
    %v2302 = vpop.permute.xlu0 %2301
    %2305 = vset.pattern.permute.xlu0 0
    %2306 = vperm.xlu0 %2305, %v1892
    %v2307 = vpop.permute.xlu0 %2306
    %2310 = vset.pattern.permute.xlu0 0
    %2311 = vperm.xlu0 %2310, %v1893
    %v2312 = vpop.permute.xlu0 %2311
    %2315 = vset.pattern.permute.xlu0 0
    %2316 = vperm.xlu0 %2315, %v1894
    %v2317 = vpop.permute.xlu0 %2316
    %2320 = vset.pattern.permute.xlu0 0
    %2321 = vperm.xlu0 %2320, %v1895
    %v2322 = vpop.permute.xlu0 %2321
    %2325 = vset.pattern.permute.xlu0 0
    %2326 = vperm.xlu0 %2325, %v1896
    %v2327 = vpop.permute.xlu0 %2326
    %2330 = vset.pattern.permute.xlu0 0
    %2331 = vperm.xlu0 %2330, %v1897
    %v2332 = vpop.permute.xlu0 %2331
    %2335 = vset.pattern.permute.xlu0 0
    %2336 = vperm.xlu0 %2335, %v1898
    %v2337 = vpop.permute.xlu0 %2336
    %2340 = vset.pattern.permute.xlu0 0
    %2341 = vperm.xlu0 %2340, %v1899
    %v2342 = vpop.permute.xlu0 %2341
    %2345 = vset.pattern.permute.xlu0 0
    %2346 = vperm.xlu0 %2345, %v1900
    %v2347 = vpop.permute.xlu0 %2346
    %2350 = vset.pattern.permute.xlu0 0
    %2351 = vperm.xlu0 %2350, %v1901
    %v2352 = vpop.permute.xlu0 %2351
    %2355 = vset.pattern.permute.xlu0 0
    %2356 = vperm.xlu0 %2355, %v1902
    %v2357 = vpop.permute.xlu0 %2356
    %2360 = vset.pattern.permute.xlu0 0
    %2361 = vperm.xlu0 %2360, %v1903
    %v2362 = vpop.permute.xlu0 %2361
    %2365 = vset.pattern.permute.xlu0 0
    %2366 = vperm.xlu0 %2365, %v1904
    %v2367 = vpop.permute.xlu0 %2366
    %2370 = vset.pattern.permute.xlu0 0
    %2371 = vperm.xlu0 %2370, %v1905
    %v2372 = vpop.permute.xlu0 %2371
    %2375 = vset.pattern.permute.xlu0 0
    %2376 = vperm.xlu0 %2375, %v1906
    %v2377 = vpop.permute.xlu0 %2376
    %2380 = vset.pattern.permute.xlu0 0
    %2381 = vperm.xlu0 %2380, %v1907
    %v2382 = vpop.permute.xlu0 %2381
    %2385 = vset.pattern.permute.xlu0 0
    %2386 = vperm.xlu0 %2385, %v1908
    %v2387 = vpop.permute.xlu0 %2386
    %v2389 = vadd.f32 %v2109, %v2192
    %v2390 = vadd.f32 %v2110, %v2192
    %v2391 = vadd.f32 %v2111, %v2197
    %v2392 = vadd.f32 %v2112, %v2197
    %v2393 = vadd.f32 %v2113, %v2202
    %v2394 = vadd.f32 %v2114, %v2202
    %v2395 = vadd.f32 %v2115, %v2207
    %v2396 = vadd.f32 %v2116, %v2207
    %v2397 = vadd.f32 %v2117, %v2212
    %v2398 = vadd.f32 %v2118, %v2212
    %v2399 = vadd.f32 %v2119, %v2217
    %v2400 = vadd.f32 %v2120, %v2217
    %v2401 = vadd.f32 %v2121, %v2222
    %v2402 = vadd.f32 %v2122, %v2222
    %v2403 = vadd.f32 %v2123, %v2227
    %v2404 = vadd.f32 %v2124, %v2227
    %v2405 = vadd.f32 %v2125, %v2232
    %v2406 = vadd.f32 %v2126, %v2232
    %v2407 = vadd.f32 %v2127, %v2237
    %v2408 = vadd.f32 %v2128, %v2237
    %v2409 = vadd.f32 %v2129, %v2242
    %v2410 = vadd.f32 %v2130, %v2242
    %v2411 = vadd.f32 %v2131, %v2247
    %v2412 = vadd.f32 %v2132, %v2247
    %v2413 = vadd.f32 %v2133, %v2252
    %v2414 = vadd.f32 %v2134, %v2252
    %v2415 = vadd.f32 %v2135, %v2257
    %v2416 = vadd.f32 %v2136, %v2257
    %v2417 = vadd.f32 %v2137, %v2262
    %v2418 = vadd.f32 %v2138, %v2262
    %v2419 = vadd.f32 %v2139, %v2267
    %v2420 = vadd.f32 %v2140, %v2267
    %v2421 = vadd.f32 %v2141, %v2272
    %v2422 = vadd.f32 %v2142, %v2272
    %v2423 = vadd.f32 %v2143, %v2277
    %v2424 = vadd.f32 %v2144, %v2277
    %v2425 = vadd.f32 %v2145, %v2282
    %v2426 = vadd.f32 %v2146, %v2282
    %v2427 = vadd.f32 %v2147, %v2287
    %v2428 = vadd.f32 %v2148, %v2287
    %v2429 = vadd.f32 %v2149, %v2292
    %v2430 = vadd.f32 %v2150, %v2292
    %v2431 = vadd.f32 %v2151, %v2297
    %v2432 = vadd.f32 %v2152, %v2297
    %v2433 = vadd.f32 %v2153, %v2302
    %v2434 = vadd.f32 %v2154, %v2302
    %v2435 = vadd.f32 %v2155, %v2307
    %v2436 = vadd.f32 %v2156, %v2307
    %v2437 = vadd.f32 %v2157, %v2312
    %v2438 = vadd.f32 %v2158, %v2312
    %v2439 = vadd.f32 %v2159, %v2317
    %v2440 = vadd.f32 %v2160, %v2317
    %v2441 = vadd.f32 %v2161, %v2322
    %v2442 = vadd.f32 %v2162, %v2322
    %v2443 = vadd.f32 %v2163, %v2327
    %v2444 = vadd.f32 %v2164, %v2327
    %v2445 = vadd.f32 %v2165, %v2332
    %v2446 = vadd.f32 %v2166, %v2332
    %v2447 = vadd.f32 %v2167, %v2337
    %v2448 = vadd.f32 %v2168, %v2337
    %v2449 = vadd.f32 %v2169, %v2342
    %v2450 = vadd.f32 %v2170, %v2342
    %v2451 = vadd.f32 %v2171, %v2347
    %v2452 = vadd.f32 %v2172, %v2347
    %v2453 = vadd.f32 %v2173, %v2352
    %v2454 = vadd.f32 %v2174, %v2352
    %v2455 = vadd.f32 %v2175, %v2357
    %v2456 = vadd.f32 %v2176, %v2357
    %v2457 = vadd.f32 %v2177, %v2362
    %v2458 = vadd.f32 %v2178, %v2362
    %v2459 = vadd.f32 %v2179, %v2367
    %v2460 = vadd.f32 %v2180, %v2367
    %v2461 = vadd.f32 %v2181, %v2372
    %v2462 = vadd.f32 %v2182, %v2372
    %v2463 = vadd.f32 %v2183, %v2377
    %v2464 = vadd.f32 %v2184, %v2377
    %v2465 = vadd.f32 %v2185, %v2382
    %v2466 = vadd.f32 %v2186, %v2382
    %v2467 = vadd.f32 %v2187, %v2387
    %v2468 = vadd.f32 %v2188, %v2387
    %v2469 = vmax.f32 %v2389, 0.0
    %v2470 = vmax.f32 %v2390, 0.0
    %v2471 = vmax.f32 %v2391, 0.0
    %v2472 = vmax.f32 %v2392, 0.0
    %v2473 = vmax.f32 %v2393, 0.0
    %v2474 = vmax.f32 %v2394, 0.0
    %v2475 = vmax.f32 %v2395, 0.0
    %v2476 = vmax.f32 %v2396, 0.0
    %v2477 = vmax.f32 %v2397, 0.0
    %v2478 = vmax.f32 %v2398, 0.0
    %v2479 = vmax.f32 %v2399, 0.0
    %v2480 = vmax.f32 %v2400, 0.0
    %v2481 = vmax.f32 %v2401, 0.0
    %v2482 = vmax.f32 %v2402, 0.0
    %v2483 = vmax.f32 %v2403, 0.0
    %v2484 = vmax.f32 %v2404, 0.0
    %v2485 = vmax.f32 %v2405, 0.0
    %v2486 = vmax.f32 %v2406, 0.0
    %v2487 = vmax.f32 %v2407, 0.0
    %v2488 = vmax.f32 %v2408, 0.0
    %v2489 = vmax.f32 %v2409, 0.0
    %v2490 = vmax.f32 %v2410, 0.0
    %v2491 = vmax.f32 %v2411, 0.0
    %v2492 = vmax.f32 %v2412, 0.0
    %v2493 = vmax.f32 %v2413, 0.0
    %v2494 = vmax.f32 %v2414, 0.0
    %v2495 = vmax.f32 %v2415, 0.0
    %v2496 = vmax.f32 %v2416, 0.0
    %v2497 = vmax.f32 %v2417, 0.0
    %v2498 = vmax.f32 %v2418, 0.0
    %v2499 = vmax.f32 %v2419, 0.0
    %v2500 = vmax.f32 %v2420, 0.0
    %v2501 = vmax.f32 %v2421, 0.0
    %v2502 = vmax.f32 %v2422, 0.0
    %v2503 = vmax.f32 %v2423, 0.0
    %v2504 = vmax.f32 %v2424, 0.0
    %v2505 = vmax.f32 %v2425, 0.0
    %v2506 = vmax.f32 %v2426, 0.0
    %v2507 = vmax.f32 %v2427, 0.0
    %v2508 = vmax.f32 %v2428, 0.0
    %v2509 = vmax.f32 %v2429, 0.0
    %v2510 = vmax.f32 %v2430, 0.0
    %v2511 = vmax.f32 %v2431, 0.0
    %v2512 = vmax.f32 %v2432, 0.0
    %v2513 = vmax.f32 %v2433, 0.0
    %v2514 = vmax.f32 %v2434, 0.0
    %v2515 = vmax.f32 %v2435, 0.0
    %v2516 = vmax.f32 %v2436, 0.0
    %v2517 = vmax.f32 %v2437, 0.0
    %v2518 = vmax.f32 %v2438, 0.0
    %v2519 = vmax.f32 %v2439, 0.0
    %v2520 = vmax.f32 %v2440, 0.0
    %v2521 = vmax.f32 %v2441, 0.0
    %v2522 = vmax.f32 %v2442, 0.0
    %v2523 = vmax.f32 %v2443, 0.0
    %v2524 = vmax.f32 %v2444, 0.0
    %v2525 = vmax.f32 %v2445, 0.0
    %v2526 = vmax.f32 %v2446, 0.0
    %v2527 = vmax.f32 %v2447, 0.0
    %v2528 = vmax.f32 %v2448, 0.0
    %v2529 = vmax.f32 %v2449, 0.0
    %v2530 = vmax.f32 %v2450, 0.0
    %v2531 = vmax.f32 %v2451, 0.0
    %v2532 = vmax.f32 %v2452, 0.0
    %v2533 = vmax.f32 %v2453, 0.0
    %v2534 = vmax.f32 %v2454, 0.0
    %v2535 = vmax.f32 %v2455, 0.0
    %v2536 = vmax.f32 %v2456, 0.0
    %v2537 = vmax.f32 %v2457, 0.0
    %v2538 = vmax.f32 %v2458, 0.0
    %v2539 = vmax.f32 %v2459, 0.0
    %v2540 = vmax.f32 %v2460, 0.0
    %v2541 = vmax.f32 %v2461, 0.0
    %v2542 = vmax.f32 %v2462, 0.0
    %v2543 = vmax.f32 %v2463, 0.0
    %v2544 = vmax.f32 %v2464, 0.0
    %v2545 = vmax.f32 %v2465, 0.0
    %v2546 = vmax.f32 %v2466, 0.0
    %v2547 = vmax.f32 %v2467, 0.0
    %v2548 = vmax.f32 %v2468, 0.0
    %2549 = vst [vmem:[#allocation5] sm:$0xff] %v2469
    %2550 = vst [vmem:[#allocation5 + $0x8] sm:$0xff] %v2470
    %2551 = vst [vmem:[#allocation5 + $0x10] sm:$0xff] %v2471
    %2552 = vst [vmem:[#allocation5 + $0x18] sm:$0xff] %v2472
    %2553 = vst [vmem:[#allocation5 + $0x20] sm:$0xff] %v2473
    %2554 = vst [vmem:[#allocation5 + $0x28] sm:$0xff] %v2474
    %2555 = vst [vmem:[#allocation5 + $0x30] sm:$0xff] %v2475
    %2556 = vst [vmem:[#allocation5 + $0x38] sm:$0xff] %v2476
    %2557 = vst [vmem:[#allocation5 + $0x40] sm:$0xff] %v2477
    %2558 = vst [vmem:[#allocation5 + $0x48] sm:$0xff] %v2478
    %2559 = vst [vmem:[#allocation5 + $0x50] sm:$0xff] %v2479
    %2560 = vst [vmem:[#allocation5 + $0x58] sm:$0xff] %v2480
    %2561 = vst [vmem:[#allocation5 + $0x60] sm:$0xff] %v2481
    %2562 = vst [vmem:[#allocation5 + $0x68] sm:$0xff] %v2482
    %2563 = vst [vmem:[#allocation5 + $0x70] sm:$0xff] %v2483
    %2564 = vst [vmem:[#allocation5 + $0x78] sm:$0xff] %v2484
    %2565 = vst [vmem:[#allocation5 + $0x80] sm:$0xff] %v2485
    %2566 = vst [vmem:[#allocation5 + $0x88] sm:$0xff] %v2486
    %2567 = vst [vmem:[#allocation5 + $0x90] sm:$0xff] %v2487
    %2568 = vst [vmem:[#allocation5 + $0x98] sm:$0xff] %v2488
    %2569 = vst [vmem:[#allocation5 + $0xa0] sm:$0xff] %v2489
    %2570 = vst [vmem:[#allocation5 + $0xa8] sm:$0xff] %v2490
    %2571 = vst [vmem:[#allocation5 + $0xb0] sm:$0xff] %v2491
    %2572 = vst [vmem:[#allocation5 + $0xb8] sm:$0xff] %v2492
    %2573 = vst [vmem:[#allocation5 + $0xc0] sm:$0xff] %v2493
    %2574 = vst [vmem:[#allocation5 + $0xc8] sm:$0xff] %v2494
    %2575 = vst [vmem:[#allocation5 + $0xd0] sm:$0xff] %v2495
    %2576 = vst [vmem:[#allocation5 + $0xd8] sm:$0xff] %v2496
    %2577 = vst [vmem:[#allocation5 + $0xe0] sm:$0xff] %v2497
    %2578 = vst [vmem:[#allocation5 + $0xe8] sm:$0xff] %v2498
    %2579 = vst [vmem:[#allocation5 + $0xf0] sm:$0xff] %v2499
    %2580 = vst [vmem:[#allocation5 + $0xf8] sm:$0xff] %v2500
    %2581 = vst [vmem:[#allocation5 + $0x100] sm:$0xff] %v2501
    %2582 = vst [vmem:[#allocation5 + $0x108] sm:$0xff] %v2502
    %2583 = vst [vmem:[#allocation5 + $0x110] sm:$0xff] %v2503
    %2584 = vst [vmem:[#allocation5 + $0x118] sm:$0xff] %v2504
    %2585 = vst [vmem:[#allocation5 + $0x120] sm:$0xff] %v2505
    %2586 = vst [vmem:[#allocation5 + $0x128] sm:$0xff] %v2506
    %2587 = vst [vmem:[#allocation5 + $0x130] sm:$0xff] %v2507
    %2588 = vst [vmem:[#allocation5 + $0x138] sm:$0xff] %v2508
    %2589 = vst [vmem:[#allocation5 + $0x140] sm:$0xff] %v2509
    %2590 = vst [vmem:[#allocation5 + $0x148] sm:$0xff] %v2510
    %2591 = vst [vmem:[#allocation5 + $0x150] sm:$0xff] %v2511
    %2592 = vst [vmem:[#allocation5 + $0x158] sm:$0xff] %v2512
    %2593 = vst [vmem:[#allocation5 + $0x160] sm:$0xff] %v2513
    %2594 = vst [vmem:[#allocation5 + $0x168] sm:$0xff] %v2514
    %2595 = vst [vmem:[#allocation5 + $0x170] sm:$0xff] %v2515
    %2596 = vst [vmem:[#allocation5 + $0x178] sm:$0xff] %v2516
    %2597 = vst [vmem:[#allocation5 + $0x180] sm:$0xff] %v2517
    %2598 = vst [vmem:[#allocation5 + $0x188] sm:$0xff] %v2518
    %2599 = vst [vmem:[#allocation5 + $0x190] sm:$0xff] %v2519
    %2600 = vst [vmem:[#allocation5 + $0x198] sm:$0xff] %v2520
    %2601 = vst [vmem:[#allocation5 + $0x1a0] sm:$0xff] %v2521
    %2602 = vst [vmem:[#allocation5 + $0x1a8] sm:$0xff] %v2522
    %2603 = vst [vmem:[#allocation5 + $0x1b0] sm:$0xff] %v2523
    %2604 = vst [vmem:[#allocation5 + $0x1b8] sm:$0xff] %v2524
    %2605 = vst [vmem:[#allocation5 + $0x1c0] sm:$0xff] %v2525
    %2606 = vst [vmem:[#allocation5 + $0x1c8] sm:$0xff] %v2526
    %2607 = vst [vmem:[#allocation5 + $0x1d0] sm:$0xff] %v2527
    %2608 = vst [vmem:[#allocation5 + $0x1d8] sm:$0xff] %v2528
    %2609 = vst [vmem:[#allocation5 + $0x1e0] sm:$0xff] %v2529
    %2610 = vst [vmem:[#allocation5 + $0x1e8] sm:$0xff] %v2530
    %2611 = vst [vmem:[#allocation5 + $0x1f0] sm:$0xff] %v2531
    %2612 = vst [vmem:[#allocation5 + $0x1f8] sm:$0xff] %v2532
    %2613 = vst [vmem:[#allocation5 + $0x200] sm:$0xff] %v2533
    %2614 = vst [vmem:[#allocation5 + $0x208] sm:$0xff] %v2534
    %2615 = vst [vmem:[#allocation5 + $0x210] sm:$0xff] %v2535
    %2616 = vst [vmem:[#allocation5 + $0x218] sm:$0xff] %v2536
    %2617 = vst [vmem:[#allocation5 + $0x220] sm:$0xff] %v2537
    %2618 = vst [vmem:[#allocation5 + $0x228] sm:$0xff] %v2538
    %2619 = vst [vmem:[#allocation5 + $0x230] sm:$0xff] %v2539
    %2620 = vst [vmem:[#allocation5 + $0x238] sm:$0xff] %v2540
    %2621 = vst [vmem:[#allocation5 + $0x240] sm:$0xff] %v2541
    %2622 = vst [vmem:[#allocation5 + $0x248] sm:$0xff] %v2542
    %2623 = vst [vmem:[#allocation5 + $0x250] sm:$0xff] %v2543
    %2624 = vst [vmem:[#allocation5 + $0x258] sm:$0xff] %v2544
    %2625 = vst [vmem:[#allocation5 + $0x260] sm:$0xff] %v2545
    %2626 = vst [vmem:[#allocation5 + $0x268] sm:$0xff] %v2546
    %2627 = vst [vmem:[#allocation5 + $0x270] sm:$0xff] %v2547
    %2628 = vst [vmem:[#allocation5 + $0x278] sm:$0xff] %v2548
    // Predicated region
    $region22: #{tpu_custom_call.1} parent=1 // pred_check
      _
    $region23: #{tpu_custom_call.1} parent=1 // pred_check_branch
      %2630 = sbr.rel (0) target = $region25
    $region24: #{tpu_custom_call.1} parent=1 // pred_region
      %s2632 = ssub.s32 10240, 10240
      %2633 = vsyncadd [#allocation4], %s2632
      %s2634 = sshll.u32 [#allocation5], 4
      %s2635 = int_to_ptr.vmem [resolvable:$true] %s2634
      %2640 = dma.vmem_to_hbm [thread:$0]  %s2635, 10240, %s4, [#allocation4], 256, 256, 16
    $region25: #{tpu_custom_call.1} parent=1 // pred_fallthru
      _
    // Predicated region
    $region26: #{tpu_custom_call.1} parent=1 // pred_check
      _
    $region27: #{tpu_custom_call.1} parent=1 // pred_check_branch
      %2642 = sbr.rel (0) target = $region29
    $region28: #{tpu_custom_call.1} parent=1 // pred_region
      %2643 = dma.done [#allocation4], 10240
    $region29: #{tpu_custom_call.1} parent=1 // pred_fallthru
      _
    %2644 = vsyncpa [#allocation3], 1
    %2645 = vsyncpa [#allocation4], 1

</llo_original>
